<compile_context>
chip_gen: v7x
topology: tpu7x:2x2x1
jax: 0.10.0
libtpu: 0.0.40
codegen_flags: <defaults>
</compile_context>

<pallas_src>
import jax
import jax.numpy as jnp
from jax import lax
from jax.experimental import pallas as pl
from jax.experimental.pallas import tpu as pltpu


def _round_up(x, m):
    return ((x + m - 1) // m) * m


def _pad_dim(a, axis, new_size):
    pads = [(0, 0)] * a.ndim
    pads[axis] = (0, new_size - a.shape[axis])
    return jnp.pad(a, pads)


def _pad_gates(a, H, Hk):
    """Pad a trailing 4H axis gate-wise to 4Hk (keeps the i/f/g/o slice layout)."""
    if Hk == H:
        return a
    lead = a.shape[:-1]
    a = a.reshape(lead + (4, H))
    a = _pad_dim(a, -1, Hk)
    return a.reshape(lead + (4 * Hk,))


def dkt_kernel(x_ref, wf_ref, whh_ref, b_ref, h0_ref, c0_ref, wcls_ref, bcls_ref,
               out_ref, h_ref, c_ref, gx_ref, hall_ref):
    """Grid = (batch_chunks, time_chunks); time axis is 'arbitrary' (serial carry).

    x_ref    : [T_tile, B_tile, I]     time-major input chunk (bf16)
    wf_ref   : [I, 4Hk]                fused (W_ih @ W_emb)^T, gate-padded (bf16)
    whh_ref  : [Hk, 4Hk]               LSTM hidden-hidden weight^T (bf16)
    b_ref    : [1, 4Hk]                b_ih + b_hh (f32)
    h0_ref   : [1, Hk]                 initial hidden row
    c0_ref   : [1, Hk]                 initial cell row
    wcls_ref : [Hk, Op]                classifier weight^T (bf16)
    bcls_ref : [1, Op]                 classifier bias (f32)
    out_ref  : [T_tile, B_tile, Op]    sigmoid(classifier(h_t))
    h_ref,c_ref : [B_tile, Hk]         persistent recurrent state (f32 VMEM)
    gx_ref   : [T_tile, B_tile, 4Hk]   hoisted input projection (bf16 VMEM)
    hall_ref : [T_tile, B_tile, Hk]    per-step hidden states (bf16 VMEM)
    """
    T_tile, B_tile, _ = x_ref.shape
    Hk = h0_ref.shape[-1]
    f32 = jnp.float32

    # (Re-)initialize the recurrent state at the start of each batch chunk's
    # time sweep (time is the minor/fastest grid axis).
    @pl.when(pl.program_id(1) == 0)
    def _init():
        h_ref[...] = jnp.broadcast_to(h0_ref[...], (B_tile, Hk)).astype(f32)
        c_ref[...] = jnp.broadcast_to(c0_ref[...], (B_tile, Hk)).astype(f32)

    # ---- hoisted input projection: one MXU matmul for the whole chunk -------
    # Bias added once (f32), stored bf16 (halves the dominant VMEM scratch).
    xx = x_ref[...].reshape(T_tile * B_tile, x_ref.shape[-1])
    gx = jnp.dot(xx, wf_ref[...], preferred_element_type=f32) + b_ref[...]
    gx_ref[...] = gx.reshape(T_tile, B_tile, 4 * Hk).astype(gx_ref.dtype)

    whh = whh_ref[...]                                            # bf16

    aligned = (Hk % 128 == 0)
    if not aligned:
        # Small-H path: per-gate lane mask, hoisted out of the loop.
        lane = lax.broadcasted_iota(jnp.int32, (B_tile, 4 * Hk), 1)
        is_tanh_lane = (lane >= 2 * Hk) & (lane < 3 * Hk)

    # ---- serial LSTM recurrence (the only truly sequential part) ------------
    def step(s, carry):
        h, c = carry
        g = gx_ref[s] + jnp.dot(h.astype(whh.dtype), whh,
                                preferred_element_type=f32)       # [B, 4Hk] f32
        if aligned:
            i_g = jax.nn.sigmoid(g[:, 0 * Hk:1 * Hk])
            f_g = jax.nn.sigmoid(g[:, 1 * Hk:2 * Hk])
            g_g = jnp.tanh(g[:, 2 * Hk:3 * Hk])
            o_g = jax.nn.sigmoid(g[:, 3 * Hk:4 * Hk])
        else:
            # Two EUP passes over the lane-dense gate vector + lane select.
            act = jnp.where(is_tanh_lane, jnp.tanh(g), jax.nn.sigmoid(g))
            i_g = act[:, 0 * Hk:1 * Hk]
            f_g = act[:, 1 * Hk:2 * Hk]
            g_g = act[:, 2 * Hk:3 * Hk]
            o_g = act[:, 3 * Hk:4 * Hk]
        c_new = f_g * c + i_g * g_g
        h_new = o_g * jnp.tanh(c_new)
        hall_ref[s] = h_new.astype(hall_ref.dtype)                # bf16 store
        return h_new, c_new

    h_fin, c_fin = lax.fori_loop(0, T_tile, step, (h_ref[...], c_ref[...]),
                                 unroll=min(T_tile, 8))
    h_ref[...] = h_fin
    c_ref[...] = c_fin

    # ---- hoisted classifier + sigmoid over the whole chunk ------------------
    hh = hall_ref[...].reshape(T_tile * B_tile, Hk)               # bf16
    logits = (jnp.dot(hh, wcls_ref[...], preferred_element_type=f32)
              + bcls_ref[...])
    out_ref[...] = jax.nn.sigmoid(logits).reshape(
        T_tile, B_tile, out_ref.shape[-1]).astype(out_ref.dtype)


def dkt_forward(inp, params, *, t_tile=None, b_tile=None, out_dtype=jnp.float32):
    """inp: [B, T, in_dim] (batch-first, like PyTorch).  Returns [B, T, out_dim]."""
    B, T, I = inp.shape
    H = params["h_init"].shape[-1]
    O = params["b_cls"].shape[-1]

    f32, bf16 = jnp.float32, jnp.bfloat16
    out_bytes = jnp.dtype(out_dtype).itemsize

    # ---- widths: do NOT pad the hidden dim when H is small ------------------
    # Small H: gate axis stays lane-dense at 4H (kernel uses the masked-EUP
    # path).  Large H: pad to a multiple of 128 so gate slices are aligned.
    Hk = H if H < 128 else _round_up(H, 128)
    Op = _round_up(O, 128)          # lane-dense (unmasked) output stores

    # ---- hardware query (best effort, safe fallback) ------------------------
    vmem_cap = 64 * 1024 * 1024
    num_tc = 1
    try:
        info = pltpu.get_tpu_info()
        vmem_cap = int(getattr(info, "vmem_capacity_bytes", vmem_cap) or vmem_cap)
        num_tc = max(1, min(2, int(getattr(info, "num_cores", 1) or 1)))
    except Exception:
        pass

    # ---- tile selection ------------------------------------------------------
    Bp8 = _round_up(B, 8)
    if b_tile is None:
        # Fill the MXU M dimension per serial step (up to 256); on 2-TC chips
        # (v7x) split the batch across cores when each half still fills the MXU.
        b_tile = min(Bp8, 256)
        if num_tc > 1 and Bp8 >= num_tc * 128:
            b_tile = min(b_tile, _round_up(pl.cdiv(Bp8, num_tc), 8))
    b_tile = _round_up(min(b_tile, Bp8), 8)

    if t_tile is None:
        # Balanced time chunking: <= t_tile padded steps, chunks <= 128.
        t_tile = _round_up(pl.cdiv(T, pl.cdiv(T, 128)), 8)
    t_tile = _round_up(min(t_tile, _round_up(T, 8)), 8)

    def _footprint(tt, bt):
        weights = ((I + Hk) * 4 * Hk + Hk * Op) * 2 + (4 * Hk + 2 * Hk + Op) * 4
        io = 2 * tt * bt * I * 2 + 2 * tt * bt * Op * out_bytes   # double-buffered tiles
        scratch = (2 * bt * Hk * 4              # h, c carry (f32)
                   + tt * bt * 4 * Hk * 2       # gx (bf16)
                   + tt * bt * Hk * 2)          # hall (bf16)
        return 2 * weights + io + scratch       # invariant weights double-buffered

    # Per-generation VMEM budget (v7x has only 64 MiB physical).
    budget = min(max(vmem_cap // 2, 24 << 20), 96 << 20)
    while _footprint(t_tile, b_tile) > budget and t_tile > 8:
        t_tile = max(8, _round_up(t_tile // 2, 8))
    while _footprint(t_tile, b_tile) > budget and b_tile > 8:
        b_tile = max(8, _round_up(b_tile // 2, 8))

    Bp = _round_up(Bp8, b_tile)
    Tp = _round_up(T, t_tile)
    nb, nt = Bp // b_tile, Tp // t_tile

    # ---- fold the bias-free embedding into the LSTM input projection --------
    # x @ W_emb^T @ W_ih^T  ==  x @ (W_ih @ W_emb)^T
    w_fused = (params["w_ih"] @ params["w_emb"]).T                     # [I, 4H]
    w_fused_p = _pad_gates(w_fused, H, Hk).astype(bf16)                # [I, 4Hk]

    whh_p = _pad_gates(params["w_hh"].T, H, Hk)                        # [H, 4Hk]
    whh_p = _pad_dim(whh_p, 0, Hk).astype(bf16)                        # [Hk, 4Hk]

    b_gates = (params["b_ih"] + params["b_hh"]).reshape(1, 4 * H)
    b_p = _pad_gates(b_gates, H, Hk).astype(f32)                       # [1, 4Hk]

    h0_p = _pad_dim(params["h_init"].reshape(1, H), 1, Hk).astype(f32)
    c0_p = _pad_dim(params["c_init"].reshape(1, H), 1, Hk).astype(f32)

    wcls_p = _pad_dim(_pad_dim(params["w_cls"].T, 0, Hk), 1, Op).astype(bf16)
    bcls_p = _pad_dim(params["b_cls"].reshape(1, O), 1, Op).astype(f32)

    # Cast to bf16 BEFORE the pad+transpose staging copy (halves its HBM
    # traffic); kernel then sees contiguous time-major [B, I] rows.
    x_p = jnp.pad(inp.astype(bf16), ((0, Bp - B), (0, Tp - T), (0, 0)))
    x_p = jnp.transpose(x_p, (1, 0, 2))                                # [Tp, Bp, I]

    in_specs = [
        pl.BlockSpec((t_tile, b_tile, I), lambda b, t: (t, b, 0)),     # x chunk
        # Grid-invariant operands (constant block index -> DMA'd once, resident).
        pl.BlockSpec((I, 4 * Hk), lambda b, t: (0, 0)),                # W_fused
        pl.BlockSpec((Hk, 4 * Hk), lambda b, t: (0, 0)),               # W_hh
        pl.BlockSpec((1, 4 * Hk), lambda b, t: (0, 0)),                # gate bias
        pl.BlockSpec((1, Hk), lambda b, t: (0, 0)),                    # h0
        pl.BlockSpec((1, Hk), lambda b, t: (0, 0)),                    # c0
        pl.BlockSpec((Hk, Op), lambda b, t: (0, 0)),                   # W_cls
        pl.BlockSpec((1, Op), lambda b, t: (0, 0)),                    # b_cls
    ]
    out_specs = pl.BlockSpec((t_tile, b_tile, Op), lambda b, t: (t, b, 0))

    scratch_shapes = [
        pltpu.VMEM((b_tile, Hk), f32),                 # h state (carried over time)
        pltpu.VMEM((b_tile, Hk), f32),                 # c state
        pltpu.VMEM((t_tile, b_tile, 4 * Hk), bf16),    # hoisted input projection
        pltpu.VMEM((t_tile, b_tile, Hk), bf16),        # hidden states of the chunk
    ]

    flops = 2 * Tp * Bp * (I * 4 * Hk + Hk * 4 * Hk + Hk * Op)
    transcendentals = (Tp * Bp * (9 * Hk + Op) if Hk % 128
                       else Tp * Bp * (5 * Hk + Op))
    bytes_accessed = (Tp * Bp * I * 2 + Tp * Bp * Op * out_bytes
                      + (I + Hk) * 4 * Hk * 2 + Hk * Op * 2
                      + (4 * Hk + 2 * Hk + Op) * 4)

    vmem_limit = int(min(vmem_cap,
                         max(32 << 20, _footprint(t_tile, b_tile) + (16 << 20))))

    out_tm = pl.pallas_call(
        dkt_kernel,
        out_shape=jax.ShapeDtypeStruct((Tp, Bp, Op), out_dtype),
        grid_spec=pltpu.PrefetchScalarGridSpec(
            num_scalar_prefetch=0,
            grid=(nb, nt),
            in_specs=in_specs,
            out_specs=out_specs,
            scratch_shapes=scratch_shapes,
        ),
        compiler_params=pltpu.CompilerParams(
            dimension_semantics=("parallel", "arbitrary"),
            vmem_limit_bytes=vmem_limit,
        ),
        cost_estimate=pl.CostEstimate(flops=flops,
                                      transcendentals=transcendentals,
                                      bytes_accessed=bytes_accessed),
    )(x_p, w_fused_p, whh_p, b_p, h0_p, c0_p, wcls_p, bcls_p)

    # Slice first (drop padded steps/rows and the Op padding), then transpose.
    return jnp.transpose(out_tm[:T, :B, :O], (1, 0, 2))               # [B, T, O]


def dkt_reference(inp, params):
    """Pure-JAX f32 reference matching torch.nn.LSTM semantics (gate order i,f,g,o)."""
    B, T, _ = inp.shape
    H = params["h_init"].shape[-1]
    x = inp @ params["w_emb"].T                                        # [B, T, E]
    h = jnp.broadcast_to(params["h_init"], (B, H))
    c = jnp.broadcast_to(params["c_init"], (B, H))
    b = params["b_ih"] + params["b_hh"]
    outs = []
    for t in range(T):
        gates = x[:, t, :] @ params["w_ih"].T + h @ params["w_hh"].T + b
        i_g = jax.nn.sigmoid(gates[:, 0 * H:1 * H])
        f_g = jax.nn.sigmoid(gates[:, 1 * H:2 * H])
        g_g = jnp.tanh(gates[:, 2 * H:3 * H])
        o_g = jax.nn.sigmoid(gates[:, 3 * H:4 * H])
        c = f_g * c + i_g * g_g
        h = o_g * jnp.tanh(c)
        outs.append(jax.nn.sigmoid(h @ params["w_cls"].T + params["b_cls"]))
    return jnp.stack(outs, axis=1)                                     # [B, T, O]


def make_params(key, in_dim, emb_dim, hidden_dim, out_dim):
    ks = jax.random.split(key, 8)
    s = 0.1
    return {
        "h_init": jax.random.normal(ks[0], (1, hidden_dim), jnp.float32),
        "c_init": jax.random.normal(ks[1], (1, hidden_dim), jnp.float32),
        "w_emb":  s * jax.random.normal(ks[2], (emb_dim, in_dim), jnp.float32),
        "w_ih":   s * jax.random.normal(ks[3], (4 * hidden_dim, emb_dim), jnp.float32),
        "w_hh":   s * jax.random.normal(ks[4], (4 * hidden_dim, hidden_dim), jnp.float32),
        "b_ih":   s * jax.random.normal(ks[5], (4 * hidden_dim,), jnp.float32),
        "b_hh":   s * jax.random.normal(ks[6], (4 * hidden_dim,), jnp.float32),
        "w_cls":  s * jax.random.normal(ks[7], (out_dim, hidden_dim), jnp.float32),
        "b_cls":  jnp.zeros((out_dim,), jnp.float32),
    }


if __name__ == "__main__":
    # small shapes: batch=4, seq=8, in_dim=32, emb_dim=32, hidden=32, items=16
    # TODO(synk): nn.LSTM dropout is a no-op for num_layers=1 (eval semantics), so it
    # is intentionally not modelled.
    B, T, IN_DIM, EMB, HID, OUT = 4, 8, 32, 32, 32, 16

    key = jax.random.PRNGKey(0)
    k_x, k_p = jax.random.split(key)
    x = jax.random.normal(k_x, (B, T, IN_DIM), jnp.float32)
    params = make_params(k_p, IN_DIM, EMB, HID, OUT)

    fwd = jax.jit(dkt_forward)
    pred = jax.block_until_ready(fwd(x, params))
    ref = dkt_reference(x, params)

    assert pred.shape == (B, T, OUT)
    err = jnp.max(jnp.abs(pred - ref))
    # bf16 matmul operands + bf16 gx/hall staging (f32 accumulation / state)
    # -> slightly looser tolerance.
    assert jnp.allclose(pred, ref, rtol=2e-2, atol=2e-2), f"max err {err}"
    print("KERNEL_OK")
</pallas_src>

<mosaic_0001>
module attributes {stable_mosaic.version = 11 : i64} {
  func.func @dkt_kernel(%arg0: i32, %arg1: i32, %arg2: memref<8x8x32xbf16, #tpu.memory_space<vmem>>, %arg3: memref<32x128xbf16, #tpu.memory_space<vmem>>, %arg4: memref<32x128xbf16, #tpu.memory_space<vmem>>, %arg5: memref<1x128xf32, #tpu.memory_space<vmem>>, %arg6: memref<1x32xf32, #tpu.memory_space<vmem>>, %arg7: memref<1x32xf32, #tpu.memory_space<vmem>>, %arg8: memref<32x128xbf16, #tpu.memory_space<vmem>>, %arg9: memref<1x128xf32, #tpu.memory_space<vmem>>, %arg10: memref<8x8x128xf32, #tpu.memory_space<vmem>>, %arg11: memref<8x32xf32, #tpu.memory_space<vmem>>, %arg12: memref<8x32xf32, #tpu.memory_space<vmem>>, %arg13: memref<8x8x128xbf16, #tpu.memory_space<vmem>>, %arg14: memref<8x8x32xbf16, #tpu.memory_space<vmem>>) attributes {dimension_semantics = [#tpu.dimension_semantics<parallel>, #tpu.dimension_semantics<arbitrary>], iteration_bounds = array<i64: 1, 1>, scalar_prefetch = 0 : i64, scratch_operands = 4 : i64, tpu.core_type = #tpu.core_type<tc>, window_params = [{transform_indices = @transform_0, window_bounds = array<i64: 8, 8, 32>}, {pipeline_mode = #tpu.pipeline_mode<synchronous>, transform_indices = @transform_1, window_bounds = array<i64: 32, 128>}, {pipeline_mode = #tpu.pipeline_mode<synchronous>, transform_indices = @transform_2, window_bounds = array<i64: 32, 128>}, {pipeline_mode = #tpu.pipeline_mode<synchronous>, transform_indices = @transform_3, window_bounds = array<i64: 1, 128>}, {pipeline_mode = #tpu.pipeline_mode<synchronous>, transform_indices = @transform_4, window_bounds = array<i64: 1, 32>}, {pipeline_mode = #tpu.pipeline_mode<synchronous>, transform_indices = @transform_5, window_bounds = array<i64: 1, 32>}, {pipeline_mode = #tpu.pipeline_mode<synchronous>, transform_indices = @transform_6, window_bounds = array<i64: 32, 128>}, {pipeline_mode = #tpu.pipeline_mode<synchronous>, transform_indices = @transform_7, window_bounds = array<i64: 1, 128>}, {transform_indices = @transform_8, window_bounds = array<i64: 8, 8, 128>}]} {
    %c0_i32 = arith.constant 0 : i32
    %0 = arith.cmpi eq, %arg1, %c0_i32 : i32
    %1 = arith.extui %0 : i1 to i32
    %c0_i32_0 = arith.constant 0 : i32
    %2 = arith.cmpi ne, %1, %c0_i32_0 : i32
    scf.if %2 {
      %c0_81 = arith.constant 0 : index
      %c0_82 = arith.constant 0 : index
      %262 = vector.load %arg6[%c0_81, %c0_82] : memref<1x32xf32, #tpu.memory_space<vmem>>, vector<1x32xf32>
      %263 = vector.shape_cast %262 : vector<1x32xf32> to vector<1x32xf32>
      %264 = vector.broadcast %263 : vector<1x32xf32> to vector<8x32xf32>
      %c0_83 = arith.constant 0 : index
      %c0_84 = arith.constant 0 : index
      %265 = vector.load %arg11[%c0_83, %c0_84] : memref<8x32xf32, #tpu.memory_space<vmem>>, vector<8x32xf32>
      tpu.vector_store %arg11[%c0_83, %c0_84], %264 {strides = array<i32>} : memref<8x32xf32, #tpu.memory_space<vmem>>, vector<8x32xf32>,
      %c0_85 = arith.constant 0 : index
      %c0_86 = arith.constant 0 : index
      %266 = vector.load %arg7[%c0_85, %c0_86] : memref<1x32xf32, #tpu.memory_space<vmem>>, vector<1x32xf32>
      %267 = vector.shape_cast %266 : vector<1x32xf32> to vector<1x32xf32>
      %268 = vector.broadcast %267 : vector<1x32xf32> to vector<8x32xf32>
      %c0_87 = arith.constant 0 : index
      %c0_88 = arith.constant 0 : index
      %269 = vector.load %arg12[%c0_87, %c0_88] : memref<8x32xf32, #tpu.memory_space<vmem>>, vector<8x32xf32>
      tpu.vector_store %arg12[%c0_87, %c0_88], %268 {strides = array<i32>} : memref<8x32xf32, #tpu.memory_space<vmem>>, vector<8x32xf32>,
    } else {
    }
    %c0 = arith.constant 0 : index
    %c0_1 = arith.constant 0 : index
    %c0_2 = arith.constant 0 : index
    %3 = vector.load %arg2[%c0, %c0_1, %c0_2] : memref<8x8x32xbf16, #tpu.memory_space<vmem>>, vector<8x8x32xbf16>
    %4 = vector.shape_cast %3 : vector<8x8x32xbf16> to vector<64x32xbf16>
    %c0_3 = arith.constant 0 : index
    %c0_4 = arith.constant 0 : index
    %5 = vector.load %arg3[%c0_3, %c0_4] : memref<32x128xbf16, #tpu.memory_space<vmem>>, vector<32x128xbf16>
    %cst = arith.constant dense<0.000000e+00> : vector<64x128xf32>
    %6 = tpu.matmul %4, %5, %cst {dimension_numbers = #tpu.dot_dimension_numbers<[1], [0], [0], [1], [0, 0, 1, 1], [], []>} : vector<64x32xbf16>, vector<32x128xbf16>, vector<64x128xf32> -> vector<64x128xf32>
    %c0_5 = arith.constant 0 : index
    %c0_6 = arith.constant 0 : index
    %7 = vector.load %arg5[%c0_5, %c0_6] : memref<1x128xf32, #tpu.memory_space<vmem>>, vector<1x128xf32>
    %8 = vector.broadcast %7 : vector<1x128xf32> to vector<64x128xf32>
    %9 = arith.addf %6, %8 : vector<64x128xf32>
    %10 = vector.shape_cast %9 : vector<64x128xf32> to vector<8x8x128xf32>
    %11 = arith.truncf %10 : vector<8x8x128xf32> to vector<8x8x128xbf16>
    %c0_7 = arith.constant 0 : index
    %c0_8 = arith.constant 0 : index
    %c0_9 = arith.constant 0 : index
    %12 = vector.load %arg13[%c0_7, %c0_8, %c0_9] : memref<8x8x128xbf16, #tpu.memory_space<vmem>>, vector<8x8x128xbf16>
    tpu.vector_store %arg13[%c0_7, %c0_8, %c0_9], %11 {strides = array<i32>} : memref<8x8x128xbf16, #tpu.memory_space<vmem>>, vector<8x8x128xbf16>,
    %c0_10 = arith.constant 0 : index
    %c0_11 = arith.constant 0 : index
    %13 = vector.load %arg4[%c0_10, %c0_11] : memref<32x128xbf16, #tpu.memory_space<vmem>>, vector<32x128xbf16>
    %14 = tpu.iota {dimensions = array<i32: 1>} : vector<8x128xi32>
    %c64_i32 = arith.constant 64 : i32
    %15 = vector.broadcast %c64_i32 : i32 to vector<8x128xi32>
    %16 = arith.cmpi sge, %14, %15 : vector<8x128xi32>
    %c96_i32 = arith.constant 96 : i32
    %17 = vector.broadcast %c96_i32 : i32 to vector<8x128xi32>
    %18 = arith.cmpi slt, %14, %17 : vector<8x128xi32>
    %19 = arith.andi %16, %18 : vector<8x128xi1>
    %c0_12 = arith.constant 0 : index
    %c0_13 = arith.constant 0 : index
    %20 = vector.load %arg11[%c0_12, %c0_13] : memref<8x32xf32, #tpu.memory_space<vmem>>, vector<8x32xf32>
    %c0_14 = arith.constant 0 : index
    %c0_15 = arith.constant 0 : index
    %21 = vector.load %arg12[%c0_14, %c0_15] : memref<8x32xf32, #tpu.memory_space<vmem>>, vector<8x32xf32>
    %c0_i32_16 = arith.constant 0 : i32
    %22 = arith.index_cast %c0_i32_16 : i32 to index
    %c0_17 = arith.constant 0 : index
    %c0_18 = arith.constant 0 : index
    %23 = vector.load %arg13[%22, %c0_17, %c0_18] : memref<8x8x128xbf16, #tpu.memory_space<vmem>>, vector<1x8x128xbf16>
    %24 = vector.shape_cast %23 : vector<1x8x128xbf16> to vector<8x128xbf16>
    %25 = arith.truncf %20 : vector<8x32xf32> to vector<8x32xbf16>
    %cst_19 = arith.constant dense<0.000000e+00> : vector<8x128xf32>
    %26 = tpu.matmul %25, %13, %cst_19 {dimension_numbers = #tpu.dot_dimension_numbers<[1], [0], [0], [1], [0, 0, 1, 1], [], []>} : vector<8x32xbf16>, vector<32x128xbf16>, vector<8x128xf32> -> vector<8x128xf32>
    %27 = arith.extf %24 : vector<8x128xbf16> to vector<8x128xf32>
    %28 = arith.addf %27, %26 : vector<8x128xf32>
    %29 = math.tanh %28 : vector<8x128xf32>
    %30 = arith.negf %28 : vector<8x128xf32>
    %31 = math.exp %30 : vector<8x128xf32>
    %cst_20 = arith.constant 1.000000e+00 : f32
    %32 = vector.broadcast %cst_20 : f32 to vector<8x128xf32>
    %33 = arith.addf %32, %31 : vector<8x128xf32>
    %34 = arith.divf %32, %33 : vector<8x128xf32>
    %35 = arith.select %19, %29, %34 : vector<8x128xi1>, vector<8x128xf32>
    %36 = vector.extract_strided_slice %35 {offsets = [0, 0], sizes = [8, 32], strides = [1, 1]} : vector<8x128xf32> to vector<8x32xf32>
    %37 = vector.extract_strided_slice %35 {offsets = [0, 32], sizes = [8, 32], strides = [1, 1]} : vector<8x128xf32> to vector<8x32xf32>
    %38 = vector.extract_strided_slice %35 {offsets = [0, 64], sizes = [8, 32], strides = [1, 1]} : vector<8x128xf32> to vector<8x32xf32>
    %39 = vector.extract_strided_slice %35 {offsets = [0, 96], sizes = [8, 32], strides = [1, 1]} : vector<8x128xf32> to vector<8x32xf32>
    %40 = arith.mulf %37, %21 : vector<8x32xf32>
    %41 = arith.mulf %36, %38 : vector<8x32xf32>
    %42 = arith.addf %40, %41 : vector<8x32xf32>
    %43 = math.tanh %42 : vector<8x32xf32>
    %44 = arith.mulf %39, %43 : vector<8x32xf32>
    %45 = arith.truncf %44 : vector<8x32xf32> to vector<8x32xbf16>
    %46 = arith.index_cast %c0_i32_16 : i32 to index
    %c0_21 = arith.constant 0 : index
    %c0_22 = arith.constant 0 : index
    %47 = vector.load %arg14[%46, %c0_21, %c0_22] : memref<8x8x32xbf16, #tpu.memory_space<vmem>>, vector<1x8x32xbf16>
    %48 = vector.shape_cast %47 : vector<1x8x32xbf16> to vector<8x32xbf16>
    %49 = vector.shape_cast %45 : vector<8x32xbf16> to vector<1x8x32xbf16>
    tpu.vector_store %arg14[%46, %c0_21, %c0_22], %49 {strides = array<i32>} : memref<8x8x32xbf16, #tpu.memory_space<vmem>>, vector<1x8x32xbf16>,
    %c1_i32 = arith.constant 1 : i32
    %50 = arith.index_cast %c1_i32 : i32 to index
    %c0_23 = arith.constant 0 : index
    %c0_24 = arith.constant 0 : index
    %51 = vector.load %arg13[%50, %c0_23, %c0_24] : memref<8x8x128xbf16, #tpu.memory_space<vmem>>, vector<1x8x128xbf16>
    %52 = vector.shape_cast %51 : vector<1x8x128xbf16> to vector<8x128xbf16>
    %53 = arith.truncf %44 : vector<8x32xf32> to vector<8x32xbf16>
    %cst_25 = arith.constant dense<0.000000e+00> : vector<8x128xf32>
    %54 = tpu.matmul %53, %13, %cst_25 {dimension_numbers = #tpu.dot_dimension_numbers<[1], [0], [0], [1], [0, 0, 1, 1], [], []>} : vector<8x32xbf16>, vector<32x128xbf16>, vector<8x128xf32> -> vector<8x128xf32>
    %55 = arith.extf %52 : vector<8x128xbf16> to vector<8x128xf32>
    %56 = arith.addf %55, %54 : vector<8x128xf32>
    %57 = math.tanh %56 : vector<8x128xf32>
    %58 = arith.negf %56 : vector<8x128xf32>
    %59 = math.exp %58 : vector<8x128xf32>
    %cst_26 = arith.constant 1.000000e+00 : f32
    %60 = vector.broadcast %cst_26 : f32 to vector<8x128xf32>
    %61 = arith.addf %60, %59 : vector<8x128xf32>
    %62 = arith.divf %60, %61 : vector<8x128xf32>
    %63 = arith.select %19, %57, %62 : vector<8x128xi1>, vector<8x128xf32>
    %64 = vector.extract_strided_slice %63 {offsets = [0, 0], sizes = [8, 32], strides = [1, 1]} : vector<8x128xf32> to vector<8x32xf32>
    %65 = vector.extract_strided_slice %63 {offsets = [0, 32], sizes = [8, 32], strides = [1, 1]} : vector<8x128xf32> to vector<8x32xf32>
    %66 = vector.extract_strided_slice %63 {offsets = [0, 64], sizes = [8, 32], strides = [1, 1]} : vector<8x128xf32> to vector<8x32xf32>
    %67 = vector.extract_strided_slice %63 {offsets = [0, 96], sizes = [8, 32], strides = [1, 1]} : vector<8x128xf32> to vector<8x32xf32>
    %68 = arith.mulf %65, %42 : vector<8x32xf32>
    %69 = arith.mulf %64, %66 : vector<8x32xf32>
    %70 = arith.addf %68, %69 : vector<8x32xf32>
    %71 = math.tanh %70 : vector<8x32xf32>
    %72 = arith.mulf %67, %71 : vector<8x32xf32>
    %73 = arith.truncf %72 : vector<8x32xf32> to vector<8x32xbf16>
    %74 = arith.index_cast %c1_i32 : i32 to index
    %c0_27 = arith.constant 0 : index
    %c0_28 = arith.constant 0 : index
    %75 = vector.load %arg14[%74, %c0_27, %c0_28] : memref<8x8x32xbf16, #tpu.memory_space<vmem>>, vector<1x8x32xbf16>
    %76 = vector.shape_cast %75 : vector<1x8x32xbf16> to vector<8x32xbf16>
    %77 = vector.shape_cast %73 : vector<8x32xbf16> to vector<1x8x32xbf16>
    tpu.vector_store %arg14[%74, %c0_27, %c0_28], %77 {strides = array<i32>} : memref<8x8x32xbf16, #tpu.memory_space<vmem>>, vector<1x8x32xbf16>,
    %c2_i32 = arith.constant 2 : i32
    %78 = arith.index_cast %c2_i32 : i32 to index
    %c0_29 = arith.constant 0 : index
    %c0_30 = arith.constant 0 : index
    %79 = vector.load %arg13[%78, %c0_29, %c0_30] : memref<8x8x128xbf16, #tpu.memory_space<vmem>>, vector<1x8x128xbf16>
    %80 = vector.shape_cast %79 : vector<1x8x128xbf16> to vector<8x128xbf16>
    %81 = arith.truncf %72 : vector<8x32xf32> to vector<8x32xbf16>
    %cst_31 = arith.constant dense<0.000000e+00> : vector<8x128xf32>
    %82 = tpu.matmul %81, %13, %cst_31 {dimension_numbers = #tpu.dot_dimension_numbers<[1], [0], [0], [1], [0, 0, 1, 1], [], []>} : vector<8x32xbf16>, vector<32x128xbf16>, vector<8x128xf32> -> vector<8x128xf32>
    %83 = arith.extf %80 : vector<8x128xbf16> to vector<8x128xf32>
    %84 = arith.addf %83, %82 : vector<8x128xf32>
    %85 = math.tanh %84 : vector<8x128xf32>
    %86 = arith.negf %84 : vector<8x128xf32>
    %87 = math.exp %86 : vector<8x128xf32>
    %cst_32 = arith.constant 1.000000e+00 : f32
    %88 = vector.broadcast %cst_32 : f32 to vector<8x128xf32>
    %89 = arith.addf %88, %87 : vector<8x128xf32>
    %90 = arith.divf %88, %89 : vector<8x128xf32>
    %91 = arith.select %19, %85, %90 : vector<8x128xi1>, vector<8x128xf32>
    %92 = vector.extract_strided_slice %91 {offsets = [0, 0], sizes = [8, 32], strides = [1, 1]} : vector<8x128xf32> to vector<8x32xf32>
    %93 = vector.extract_strided_slice %91 {offsets = [0, 32], sizes = [8, 32], strides = [1, 1]} : vector<8x128xf32> to vector<8x32xf32>
    %94 = vector.extract_strided_slice %91 {offsets = [0, 64], sizes = [8, 32], strides = [1, 1]} : vector<8x128xf32> to vector<8x32xf32>
    %95 = vector.extract_strided_slice %91 {offsets = [0, 96], sizes = [8, 32], strides = [1, 1]} : vector<8x128xf32> to vector<8x32xf32>
    %96 = arith.mulf %93, %70 : vector<8x32xf32>
    %97 = arith.mulf %92, %94 : vector<8x32xf32>
    %98 = arith.addf %96, %97 : vector<8x32xf32>
    %99 = math.tanh %98 : vector<8x32xf32>
    %100 = arith.mulf %95, %99 : vector<8x32xf32>
    %101 = arith.truncf %100 : vector<8x32xf32> to vector<8x32xbf16>
    %102 = arith.index_cast %c2_i32 : i32 to index
    %c0_33 = arith.constant 0 : index
    %c0_34 = arith.constant 0 : index
    %103 = vector.load %arg14[%102, %c0_33, %c0_34] : memref<8x8x32xbf16, #tpu.memory_space<vmem>>, vector<1x8x32xbf16>
    %104 = vector.shape_cast %103 : vector<1x8x32xbf16> to vector<8x32xbf16>
    %105 = vector.shape_cast %101 : vector<8x32xbf16> to vector<1x8x32xbf16>
    tpu.vector_store %arg14[%102, %c0_33, %c0_34], %105 {strides = array<i32>} : memref<8x8x32xbf16, #tpu.memory_space<vmem>>, vector<1x8x32xbf16>,
    %c3_i32 = arith.constant 3 : i32
    %106 = arith.index_cast %c3_i32 : i32 to index
    %c0_35 = arith.constant 0 : index
    %c0_36 = arith.constant 0 : index
    %107 = vector.load %arg13[%106, %c0_35, %c0_36] : memref<8x8x128xbf16, #tpu.memory_space<vmem>>, vector<1x8x128xbf16>
    %108 = vector.shape_cast %107 : vector<1x8x128xbf16> to vector<8x128xbf16>
    %109 = arith.truncf %100 : vector<8x32xf32> to vector<8x32xbf16>
    %cst_37 = arith.constant dense<0.000000e+00> : vector<8x128xf32>
    %110 = tpu.matmul %109, %13, %cst_37 {dimension_numbers = #tpu.dot_dimension_numbers<[1], [0], [0], [1], [0, 0, 1, 1], [], []>} : vector<8x32xbf16>, vector<32x128xbf16>, vector<8x128xf32> -> vector<8x128xf32>
    %111 = arith.extf %108 : vector<8x128xbf16> to vector<8x128xf32>
    %112 = arith.addf %111, %110 : vector<8x128xf32>
    %113 = math.tanh %112 : vector<8x128xf32>
    %114 = arith.negf %112 : vector<8x128xf32>
    %115 = math.exp %114 : vector<8x128xf32>
    %cst_38 = arith.constant 1.000000e+00 : f32
    %116 = vector.broadcast %cst_38 : f32 to vector<8x128xf32>
    %117 = arith.addf %116, %115 : vector<8x128xf32>
    %118 = arith.divf %116, %117 : vector<8x128xf32>
    %119 = arith.select %19, %113, %118 : vector<8x128xi1>, vector<8x128xf32>
    %120 = vector.extract_strided_slice %119 {offsets = [0, 0], sizes = [8, 32], strides = [1, 1]} : vector<8x128xf32> to vector<8x32xf32>
    %121 = vector.extract_strided_slice %119 {offsets = [0, 32], sizes = [8, 32], strides = [1, 1]} : vector<8x128xf32> to vector<8x32xf32>
    %122 = vector.extract_strided_slice %119 {offsets = [0, 64], sizes = [8, 32], strides = [1, 1]} : vector<8x128xf32> to vector<8x32xf32>
    %123 = vector.extract_strided_slice %119 {offsets = [0, 96], sizes = [8, 32], strides = [1, 1]} : vector<8x128xf32> to vector<8x32xf32>
    %124 = arith.mulf %121, %98 : vector<8x32xf32>
    %125 = arith.mulf %120, %122 : vector<8x32xf32>
    %126 = arith.addf %124, %125 : vector<8x32xf32>
    %127 = math.tanh %126 : vector<8x32xf32>
    %128 = arith.mulf %123, %127 : vector<8x32xf32>
    %129 = arith.truncf %128 : vector<8x32xf32> to vector<8x32xbf16>
    %130 = arith.index_cast %c3_i32 : i32 to index
    %c0_39 = arith.constant 0 : index
    %c0_40 = arith.constant 0 : index
    %131 = vector.load %arg14[%130, %c0_39, %c0_40] : memref<8x8x32xbf16, #tpu.memory_space<vmem>>, vector<1x8x32xbf16>
    %132 = vector.shape_cast %131 : vector<1x8x32xbf16> to vector<8x32xbf16>
    %133 = vector.shape_cast %129 : vector<8x32xbf16> to vector<1x8x32xbf16>
    tpu.vector_store %arg14[%130, %c0_39, %c0_40], %133 {strides = array<i32>} : memref<8x8x32xbf16, #tpu.memory_space<vmem>>, vector<1x8x32xbf16>,
    %c4_i32 = arith.constant 4 : i32
    %134 = arith.index_cast %c4_i32 : i32 to index
    %c0_41 = arith.constant 0 : index
    %c0_42 = arith.constant 0 : index
    %135 = vector.load %arg13[%134, %c0_41, %c0_42] : memref<8x8x128xbf16, #tpu.memory_space<vmem>>, vector<1x8x128xbf16>
    %136 = vector.shape_cast %135 : vector<1x8x128xbf16> to vector<8x128xbf16>
    %137 = arith.truncf %128 : vector<8x32xf32> to vector<8x32xbf16>
    %cst_43 = arith.constant dense<0.000000e+00> : vector<8x128xf32>
    %138 = tpu.matmul %137, %13, %cst_43 {dimension_numbers = #tpu.dot_dimension_numbers<[1], [0], [0], [1], [0, 0, 1, 1], [], []>} : vector<8x32xbf16>, vector<32x128xbf16>, vector<8x128xf32> -> vector<8x128xf32>
    %139 = arith.extf %136 : vector<8x128xbf16> to vector<8x128xf32>
    %140 = arith.addf %139, %138 : vector<8x128xf32>
    %141 = math.tanh %140 : vector<8x128xf32>
    %142 = arith.negf %140 : vector<8x128xf32>
    %143 = math.exp %142 : vector<8x128xf32>
    %cst_44 = arith.constant 1.000000e+00 : f32
    %144 = vector.broadcast %cst_44 : f32 to vector<8x128xf32>
    %145 = arith.addf %144, %143 : vector<8x128xf32>
    %146 = arith.divf %144, %145 : vector<8x128xf32>
    %147 = arith.select %19, %141, %146 : vector<8x128xi1>, vector<8x128xf32>
    %148 = vector.extract_strided_slice %147 {offsets = [0, 0], sizes = [8, 32], strides = [1, 1]} : vector<8x128xf32> to vector<8x32xf32>
    %149 = vector.extract_strided_slice %147 {offsets = [0, 32], sizes = [8, 32], strides = [1, 1]} : vector<8x128xf32> to vector<8x32xf32>
    %150 = vector.extract_strided_slice %147 {offsets = [0, 64], sizes = [8, 32], strides = [1, 1]} : vector<8x128xf32> to vector<8x32xf32>
    %151 = vector.extract_strided_slice %147 {offsets = [0, 96], sizes = [8, 32], strides = [1, 1]} : vector<8x128xf32> to vector<8x32xf32>
    %152 = arith.mulf %149, %126 : vector<8x32xf32>
    %153 = arith.mulf %148, %150 : vector<8x32xf32>
    %154 = arith.addf %152, %153 : vector<8x32xf32>
    %155 = math.tanh %154 : vector<8x32xf32>
    %156 = arith.mulf %151, %155 : vector<8x32xf32>
    %157 = arith.truncf %156 : vector<8x32xf32> to vector<8x32xbf16>
    %158 = arith.index_cast %c4_i32 : i32 to index
    %c0_45 = arith.constant 0 : index
    %c0_46 = arith.constant 0 : index
    %159 = vector.load %arg14[%158, %c0_45, %c0_46] : memref<8x8x32xbf16, #tpu.memory_space<vmem>>, vector<1x8x32xbf16>
    %160 = vector.shape_cast %159 : vector<1x8x32xbf16> to vector<8x32xbf16>
    %161 = vector.shape_cast %157 : vector<8x32xbf16> to vector<1x8x32xbf16>
    tpu.vector_store %arg14[%158, %c0_45, %c0_46], %161 {strides = array<i32>} : memref<8x8x32xbf16, #tpu.memory_space<vmem>>, vector<1x8x32xbf16>,
    %c5_i32 = arith.constant 5 : i32
    %162 = arith.index_cast %c5_i32 : i32 to index
    %c0_47 = arith.constant 0 : index
    %c0_48 = arith.constant 0 : index
    %163 = vector.load %arg13[%162, %c0_47, %c0_48] : memref<8x8x128xbf16, #tpu.memory_space<vmem>>, vector<1x8x128xbf16>
    %164 = vector.shape_cast %163 : vector<1x8x128xbf16> to vector<8x128xbf16>
    %165 = arith.truncf %156 : vector<8x32xf32> to vector<8x32xbf16>
    %cst_49 = arith.constant dense<0.000000e+00> : vector<8x128xf32>
    %166 = tpu.matmul %165, %13, %cst_49 {dimension_numbers = #tpu.dot_dimension_numbers<[1], [0], [0], [1], [0, 0, 1, 1], [], []>} : vector<8x32xbf16>, vector<32x128xbf16>, vector<8x128xf32> -> vector<8x128xf32>
    %167 = arith.extf %164 : vector<8x128xbf16> to vector<8x128xf32>
    %168 = arith.addf %167, %166 : vector<8x128xf32>
    %169 = math.tanh %168 : vector<8x128xf32>
    %170 = arith.negf %168 : vector<8x128xf32>
    %171 = math.exp %170 : vector<8x128xf32>
    %cst_50 = arith.constant 1.000000e+00 : f32
    %172 = vector.broadcast %cst_50 : f32 to vector<8x128xf32>
    %173 = arith.addf %172, %171 : vector<8x128xf32>
    %174 = arith.divf %172, %173 : vector<8x128xf32>
    %175 = arith.select %19, %169, %174 : vector<8x128xi1>, vector<8x128xf32>
    %176 = vector.extract_strided_slice %175 {offsets = [0, 0], sizes = [8, 32], strides = [1, 1]} : vector<8x128xf32> to vector<8x32xf32>
    %177 = vector.extract_strided_slice %175 {offsets = [0, 32], sizes = [8, 32], strides = [1, 1]} : vector<8x128xf32> to vector<8x32xf32>
    %178 = vector.extract_strided_slice %175 {offsets = [0, 64], sizes = [8, 32], strides = [1, 1]} : vector<8x128xf32> to vector<8x32xf32>
    %179 = vector.extract_strided_slice %175 {offsets = [0, 96], sizes = [8, 32], strides = [1, 1]} : vector<8x128xf32> to vector<8x32xf32>
    %180 = arith.mulf %177, %154 : vector<8x32xf32>
    %181 = arith.mulf %176, %178 : vector<8x32xf32>
    %182 = arith.addf %180, %181 : vector<8x32xf32>
    %183 = math.tanh %182 : vector<8x32xf32>
    %184 = arith.mulf %179, %183 : vector<8x32xf32>
    %185 = arith.truncf %184 : vector<8x32xf32> to vector<8x32xbf16>
    %186 = arith.index_cast %c5_i32 : i32 to index
    %c0_51 = arith.constant 0 : index
    %c0_52 = arith.constant 0 : index
    %187 = vector.load %arg14[%186, %c0_51, %c0_52] : memref<8x8x32xbf16, #tpu.memory_space<vmem>>, vector<1x8x32xbf16>
    %188 = vector.shape_cast %187 : vector<1x8x32xbf16> to vector<8x32xbf16>
    %189 = vector.shape_cast %185 : vector<8x32xbf16> to vector<1x8x32xbf16>
    tpu.vector_store %arg14[%186, %c0_51, %c0_52], %189 {strides = array<i32>} : memref<8x8x32xbf16, #tpu.memory_space<vmem>>, vector<1x8x32xbf16>,
    %c6_i32 = arith.constant 6 : i32
    %190 = arith.index_cast %c6_i32 : i32 to index
    %c0_53 = arith.constant 0 : index
    %c0_54 = arith.constant 0 : index
    %191 = vector.load %arg13[%190, %c0_53, %c0_54] : memref<8x8x128xbf16, #tpu.memory_space<vmem>>, vector<1x8x128xbf16>
    %192 = vector.shape_cast %191 : vector<1x8x128xbf16> to vector<8x128xbf16>
    %193 = arith.truncf %184 : vector<8x32xf32> to vector<8x32xbf16>
    %cst_55 = arith.constant dense<0.000000e+00> : vector<8x128xf32>
    %194 = tpu.matmul %193, %13, %cst_55 {dimension_numbers = #tpu.dot_dimension_numbers<[1], [0], [0], [1], [0, 0, 1, 1], [], []>} : vector<8x32xbf16>, vector<32x128xbf16>, vector<8x128xf32> -> vector<8x128xf32>
    %195 = arith.extf %192 : vector<8x128xbf16> to vector<8x128xf32>
    %196 = arith.addf %195, %194 : vector<8x128xf32>
    %197 = math.tanh %196 : vector<8x128xf32>
    %198 = arith.negf %196 : vector<8x128xf32>
    %199 = math.exp %198 : vector<8x128xf32>
    %cst_56 = arith.constant 1.000000e+00 : f32
    %200 = vector.broadcast %cst_56 : f32 to vector<8x128xf32>
    %201 = arith.addf %200, %199 : vector<8x128xf32>
    %202 = arith.divf %200, %201 : vector<8x128xf32>
    %203 = arith.select %19, %197, %202 : vector<8x128xi1>, vector<8x128xf32>
    %204 = vector.extract_strided_slice %203 {offsets = [0, 0], sizes = [8, 32], strides = [1, 1]} : vector<8x128xf32> to vector<8x32xf32>
    %205 = vector.extract_strided_slice %203 {offsets = [0, 32], sizes = [8, 32], strides = [1, 1]} : vector<8x128xf32> to vector<8x32xf32>
    %206 = vector.extract_strided_slice %203 {offsets = [0, 64], sizes = [8, 32], strides = [1, 1]} : vector<8x128xf32> to vector<8x32xf32>
    %207 = vector.extract_strided_slice %203 {offsets = [0, 96], sizes = [8, 32], strides = [1, 1]} : vector<8x128xf32> to vector<8x32xf32>
    %208 = arith.mulf %205, %182 : vector<8x32xf32>
    %209 = arith.mulf %204, %206 : vector<8x32xf32>
    %210 = arith.addf %208, %209 : vector<8x32xf32>
    %211 = math.tanh %210 : vector<8x32xf32>
    %212 = arith.mulf %207, %211 : vector<8x32xf32>
    %213 = arith.truncf %212 : vector<8x32xf32> to vector<8x32xbf16>
    %214 = arith.index_cast %c6_i32 : i32 to index
    %c0_57 = arith.constant 0 : index
    %c0_58 = arith.constant 0 : index
    %215 = vector.load %arg14[%214, %c0_57, %c0_58] : memref<8x8x32xbf16, #tpu.memory_space<vmem>>, vector<1x8x32xbf16>
    %216 = vector.shape_cast %215 : vector<1x8x32xbf16> to vector<8x32xbf16>
    %217 = vector.shape_cast %213 : vector<8x32xbf16> to vector<1x8x32xbf16>
    tpu.vector_store %arg14[%214, %c0_57, %c0_58], %217 {strides = array<i32>} : memref<8x8x32xbf16, #tpu.memory_space<vmem>>, vector<1x8x32xbf16>,
    %c7_i32 = arith.constant 7 : i32
    %218 = arith.index_cast %c7_i32 : i32 to index
    %c0_59 = arith.constant 0 : index
    %c0_60 = arith.constant 0 : index
    %219 = vector.load %arg13[%218, %c0_59, %c0_60] : memref<8x8x128xbf16, #tpu.memory_space<vmem>>, vector<1x8x128xbf16>
    %220 = vector.shape_cast %219 : vector<1x8x128xbf16> to vector<8x128xbf16>
    %221 = arith.truncf %212 : vector<8x32xf32> to vector<8x32xbf16>
    %cst_61 = arith.constant dense<0.000000e+00> : vector<8x128xf32>
    %222 = tpu.matmul %221, %13, %cst_61 {dimension_numbers = #tpu.dot_dimension_numbers<[1], [0], [0], [1], [0, 0, 1, 1], [], []>} : vector<8x32xbf16>, vector<32x128xbf16>, vector<8x128xf32> -> vector<8x128xf32>
    %223 = arith.extf %220 : vector<8x128xbf16> to vector<8x128xf32>
    %224 = arith.addf %223, %222 : vector<8x128xf32>
    %225 = math.tanh %224 : vector<8x128xf32>
    %226 = arith.negf %224 : vector<8x128xf32>
    %227 = math.exp %226 : vector<8x128xf32>
    %cst_62 = arith.constant 1.000000e+00 : f32
    %228 = vector.broadcast %cst_62 : f32 to vector<8x128xf32>
    %229 = arith.addf %228, %227 : vector<8x128xf32>
    %230 = arith.divf %228, %229 : vector<8x128xf32>
    %231 = arith.select %19, %225, %230 : vector<8x128xi1>, vector<8x128xf32>
    %232 = vector.extract_strided_slice %231 {offsets = [0, 0], sizes = [8, 32], strides = [1, 1]} : vector<8x128xf32> to vector<8x32xf32>
    %233 = vector.extract_strided_slice %231 {offsets = [0, 32], sizes = [8, 32], strides = [1, 1]} : vector<8x128xf32> to vector<8x32xf32>
    %234 = vector.extract_strided_slice %231 {offsets = [0, 64], sizes = [8, 32], strides = [1, 1]} : vector<8x128xf32> to vector<8x32xf32>
    %235 = vector.extract_strided_slice %231 {offsets = [0, 96], sizes = [8, 32], strides = [1, 1]} : vector<8x128xf32> to vector<8x32xf32>
    %236 = arith.mulf %233, %210 : vector<8x32xf32>
    %237 = arith.mulf %232, %234 : vector<8x32xf32>
    %238 = arith.addf %236, %237 : vector<8x32xf32>
    %239 = math.tanh %238 : vector<8x32xf32>
    %240 = arith.mulf %235, %239 : vector<8x32xf32>
    %241 = arith.truncf %240 : vector<8x32xf32> to vector<8x32xbf16>
    %242 = arith.index_cast %c7_i32 : i32 to index
    %c0_63 = arith.constant 0 : index
    %c0_64 = arith.constant 0 : index
    %243 = vector.load %arg14[%242, %c0_63, %c0_64] : memref<8x8x32xbf16, #tpu.memory_space<vmem>>, vector<1x8x32xbf16>
    %244 = vector.shape_cast %243 : vector<1x8x32xbf16> to vector<8x32xbf16>
    %245 = vector.shape_cast %241 : vector<8x32xbf16> to vector<1x8x32xbf16>
    tpu.vector_store %arg14[%242, %c0_63, %c0_64], %245 {strides = array<i32>} : memref<8x8x32xbf16, #tpu.memory_space<vmem>>, vector<1x8x32xbf16>,
    %c8_i32 = arith.constant 8 : i32
    %c0_65 = arith.constant 0 : index
    %c0_66 = arith.constant 0 : index
    %246 = vector.load %arg11[%c0_65, %c0_66] : memref<8x32xf32, #tpu.memory_space<vmem>>, vector<8x32xf32>
    tpu.vector_store %arg11[%c0_65, %c0_66], %240 {strides = array<i32>} : memref<8x32xf32, #tpu.memory_space<vmem>>, vector<8x32xf32>,
    %c0_67 = arith.constant 0 : index
    %c0_68 = arith.constant 0 : index
    %247 = vector.load %arg12[%c0_67, %c0_68] : memref<8x32xf32, #tpu.memory_space<vmem>>, vector<8x32xf32>
    tpu.vector_store %arg12[%c0_67, %c0_68], %238 {strides = array<i32>} : memref<8x32xf32, #tpu.memory_space<vmem>>, vector<8x32xf32>,
    %c0_69 = arith.constant 0 : index
    %c0_70 = arith.constant 0 : index
    %c0_71 = arith.constant 0 : index
    %248 = vector.load %arg14[%c0_69, %c0_70, %c0_71] : memref<8x8x32xbf16, #tpu.memory_space<vmem>>, vector<8x8x32xbf16>
    %249 = vector.shape_cast %248 : vector<8x8x32xbf16> to vector<64x32xbf16>
    %c0_72 = arith.constant 0 : index
    %c0_73 = arith.constant 0 : index
    %250 = vector.load %arg8[%c0_72, %c0_73] : memref<32x128xbf16, #tpu.memory_space<vmem>>, vector<32x128xbf16>
    %cst_74 = arith.constant dense<0.000000e+00> : vector<64x128xf32>
    %251 = tpu.matmul %249, %250, %cst_74 {dimension_numbers = #tpu.dot_dimension_numbers<[1], [0], [0], [1], [0, 0, 1, 1], [], []>} : vector<64x32xbf16>, vector<32x128xbf16>, vector<64x128xf32> -> vector<64x128xf32>
    %c0_75 = arith.constant 0 : index
    %c0_76 = arith.constant 0 : index
    %252 = vector.load %arg9[%c0_75, %c0_76] : memref<1x128xf32, #tpu.memory_space<vmem>>, vector<1x128xf32>
    %253 = vector.broadcast %252 : vector<1x128xf32> to vector<64x128xf32>
    %254 = arith.addf %251, %253 : vector<64x128xf32>
    %255 = arith.negf %254 : vector<64x128xf32>
    %256 = math.exp %255 : vector<64x128xf32>
    %cst_77 = arith.constant 1.000000e+00 : f32
    %257 = vector.broadcast %cst_77 : f32 to vector<64x128xf32>
    %258 = arith.addf %257, %256 : vector<64x128xf32>
    %259 = arith.divf %257, %258 : vector<64x128xf32>
    %260 = vector.shape_cast %259 : vector<64x128xf32> to vector<8x8x128xf32>
    %c0_78 = arith.constant 0 : index
    %c0_79 = arith.constant 0 : index
    %c0_80 = arith.constant 0 : index
    %261 = vector.load %arg10[%c0_78, %c0_79, %c0_80] : memref<8x8x128xf32, #tpu.memory_space<vmem>>, vector<8x8x128xf32>
    tpu.vector_store %arg10[%c0_78, %c0_79, %c0_80], %260 {strides = array<i32>} : memref<8x8x128xf32, #tpu.memory_space<vmem>>, vector<8x8x128xf32>,
    return
  }
  func.func @transform_0(%arg0: i32, %arg1: i32) -> (i32, i32, i32) {
    %c0_i32 = arith.constant 0 : i32
    %c0_i32_0 = arith.constant 0 : i32
    return %arg1, %arg0, %c0_i32 : i32, i32, i32
  }
  func.func @transform_1(%arg0: i32, %arg1: i32) -> (i32, i32) {
    %c0_i32 = arith.constant 0 : i32
    %c0_i32_0 = arith.constant 0 : i32
    %c0_i32_1 = arith.constant 0 : i32
    return %c0_i32, %c0_i32_0 : i32, i32
  }
  func.func @transform_2(%arg0: i32, %arg1: i32) -> (i32, i32) {
    %c0_i32 = arith.constant 0 : i32
    %c0_i32_0 = arith.constant 0 : i32
    %c0_i32_1 = arith.constant 0 : i32
    return %c0_i32, %c0_i32_0 : i32, i32
  }
  func.func @transform_3(%arg0: i32, %arg1: i32) -> (i32, i32) {
    %c0_i32 = arith.constant 0 : i32
    %c0_i32_0 = arith.constant 0 : i32
    %c0_i32_1 = arith.constant 0 : i32
    return %c0_i32, %c0_i32_0 : i32, i32
  }
  func.func @transform_4(%arg0: i32, %arg1: i32) -> (i32, i32) {
    %c0_i32 = arith.constant 0 : i32
    %c0_i32_0 = arith.constant 0 : i32
    %c0_i32_1 = arith.constant 0 : i32
    return %c0_i32, %c0_i32_0 : i32, i32
  }
  func.func @transform_5(%arg0: i32, %arg1: i32) -> (i32, i32) {
    %c0_i32 = arith.constant 0 : i32
    %c0_i32_0 = arith.constant 0 : i32
    %c0_i32_1 = arith.constant 0 : i32
    return %c0_i32, %c0_i32_0 : i32, i32
  }
  func.func @transform_6(%arg0: i32, %arg1: i32) -> (i32, i32) {
    %c0_i32 = arith.constant 0 : i32
    %c0_i32_0 = arith.constant 0 : i32
    %c0_i32_1 = arith.constant 0 : i32
    return %c0_i32, %c0_i32_0 : i32, i32
  }
  func.func @transform_7(%arg0: i32, %arg1: i32) -> (i32, i32) {
    %c0_i32 = arith.constant 0 : i32
    %c0_i32_0 = arith.constant 0 : i32
    %c0_i32_1 = arith.constant 0 : i32
    return %c0_i32, %c0_i32_0 : i32, i32
  }
  func.func @transform_8(%arg0: i32, %arg1: i32) -> (i32, i32, i32) {
    %c0_i32 = arith.constant 0 : i32
    %c0_i32_0 = arith.constant 0 : i32
    return %arg1, %arg0, %c0_i32 : i32, i32, i32
  }
}

</mosaic_0001>

<llo_original>
// kernel: dkt_forward.1
$region0: #{dkt_forward.1}
  #allocation0 [shape = 'u32[]', space=smem, size = 0x4, offset = 0x4, fixed_abs, tag = 'smem constant byte address 0x4 - core index']
  #allocation1 [shape = 'u32[144,128]{1,0:T(1,128)}', space=vmem, size = 0x12000, scoped, tag = 'internal scratch']
  #allocation2 [shape = 'f32[8,32]{1,0:T(8,128)}', space=vmem, size = 0x1000, scoped, tag = 'scratch operand']
  #allocation3 [shape = 'f32[8,32]{1,0:T(8,128)}', space=vmem, size = 0x1000, scoped, tag = 'scratch operand']
  #allocation4 [shape = 'bf16[8,8,128]{2,1,0:T(8,128)(2,1)}', space=vmem, size = 0x4000, scoped, tag = 'scratch operand']
  #allocation5 [shape = 'bf16[8,8,32]{2,1,0:T(8,128)(2,1)}', space=vmem, size = 0x4000, scoped, tag = 'scratch operand']
  %s0 = inlined_call_operand.vmem [shape: bf16[8,8,32], index: 0, kind: input, shape index: {}]
  %s1 = inlined_call_operand.vmem [shape: bf16[32,128], index: 1, kind: input, shape index: {}]
  %s2 = inlined_call_operand.vmem [shape: bf16[32,128], index: 2, kind: input, shape index: {}]
  %s3 = inlined_call_operand.vmem [shape: f32[1,128], index: 3, kind: input, shape index: {}]
  %s4 = inlined_call_operand.vmem [shape: f32[1,32], index: 4, kind: input, shape index: {}]
  %s5 = inlined_call_operand.vmem [shape: f32[1,32], index: 5, kind: input, shape index: {}]
  %s6 = inlined_call_operand.vmem [shape: bf16[32,128], index: 6, kind: input, shape index: {}]
  %s7 = inlined_call_operand.vmem [shape: f32[1,128], index: 7, kind: input, shape index: {}]
  %s8 = inlined_call_operand.vmem [shape: f32[8,8,128], index: 8, kind: output, shape index: {}]
  %s9 = sld [smem:[#allocation0]]
  $region46: #{dkt_forward.1} parent=0
    _
  %s11 = ssub.s32 1, %s9
  %s12 = scalar_select 0, %s11, %s9
  // Predicated region
  $region2: #{dkt_forward.1} parent=0 // pred_check
    _
  $region3: #{dkt_forward.1} parent=0 // pred_check_branch
    %14 = sbr.rel (0) target = $region5
  $region4: #{dkt_forward.1} parent=0 // pred_region
    _
  $region5: #{dkt_forward.1} parent=0 // pred_fallthru
    _
  // Predicated region
  $region6: #{dkt_forward.1} parent=0 // pred_check
    _
  $region7: #{dkt_forward.1} parent=0 // pred_check_branch
    %16 = sbr.rel (0) target = $region9
  $region8: #{dkt_forward.1} parent=0 // pred_region
    _
  $region9: #{dkt_forward.1} parent=0 // pred_fallthru
    _
  // Predicated region
  $region10: #{dkt_forward.1} parent=0 // pred_check
    _
  $region11: #{dkt_forward.1} parent=0 // pred_check_branch
    %18 = sbr.rel (0) target = $region13
  $region12: #{dkt_forward.1} parent=0 // pred_region
    _
  $region13: #{dkt_forward.1} parent=0 // pred_fallthru
    _
  // Predicated region
  $region14: #{dkt_forward.1} parent=0 // pred_check
    _
  $region15: #{dkt_forward.1} parent=0 // pred_check_branch
    %20 = sbr.rel (0) target = $region17
  $region16: #{dkt_forward.1} parent=0 // pred_region
    _
  $region17: #{dkt_forward.1} parent=0 // pred_fallthru
    _
  // Predicated region
  $region18: #{dkt_forward.1} parent=0 // pred_check
    _
  $region19: #{dkt_forward.1} parent=0 // pred_check_branch
    %22 = sbr.rel (0) target = $region21
  $region20: #{dkt_forward.1} parent=0 // pred_region
    _
  $region21: #{dkt_forward.1} parent=0 // pred_fallthru
    _
  // Predicated region
  $region22: #{dkt_forward.1} parent=0 // pred_check
    _
  $region23: #{dkt_forward.1} parent=0 // pred_check_branch
    %24 = sbr.rel (0) target = $region25
  $region24: #{dkt_forward.1} parent=0 // pred_region
    _
  $region25: #{dkt_forward.1} parent=0 // pred_fallthru
    _
  // Predicated region
  $region26: #{dkt_forward.1} parent=0 // pred_check
    _
  $region27: #{dkt_forward.1} parent=0 // pred_check_branch
    %26 = sbr.rel (0) target = $region29
  $region28: #{dkt_forward.1} parent=0 // pred_region
    _
  $region29: #{dkt_forward.1} parent=0 // pred_fallthru
    _
  // Predicated region
  $region30: #{dkt_forward.1} parent=0 // pred_check
    _
  $region31: #{dkt_forward.1} parent=0 // pred_check_branch
    %28 = sbr.rel (0) target = $region33
  $region32: #{dkt_forward.1} parent=0 // pred_region
    _
  $region33: #{dkt_forward.1} parent=0 // pred_fallthru
    _
  %p30 = scmp.eq.s32.totalorder 0, 0
  // Predicated region
  $region34: #{dkt_forward.1} parent=0 // pred_check
    %p31 = pneg %p30
  $region35: #{dkt_forward.1} parent=0 // pred_check_branch
    %33 = sbr.rel (%p31) target = $region37
  $region36: #{dkt_forward.1} parent=0 // pred_region
    %v34 = vld [vmem:[%s4] sm:$0x1]
    %v36 = vlaneseq
    %v37 = vshrl.u32 %v36, 7
    %v38 = vsub.s32 0, %v37
    %v39 = vrot.slane %v34, %v38
    %vm41 = vcmask 261120
    %42 = vst.msk [vmem:[#allocation2] sm:$0xff] %vm41, %v39
    %v43 = vld [vmem:[%s5] sm:$0x1]
    %v45 = vlaneseq
    %v46 = vshrl.u32 %v45, 7
    %v47 = vsub.s32 0, %v46
    %v48 = vrot.slane %v43, %v47
    %50 = vst.msk [vmem:[#allocation3] sm:$0xff] %vm41, %v48
  $region37: #{dkt_forward.1} parent=0 // pred_fallthru
    _
  %v51 = vld [vmem:[%s0] sm:$0xf]
  %v52 = vld [vmem:[%s0 + $0x4] sm:$0xf]
  %v53 = vld [vmem:[%s0 + $0x8] sm:$0xf]
  %v54 = vld [vmem:[%s0 + $0xc] sm:$0xf]
  %v55 = vld [vmem:[%s0 + $0x10] sm:$0xf]
  %v56 = vld [vmem:[%s0 + $0x14] sm:$0xf]
  %v57 = vld [vmem:[%s0 + $0x18] sm:$0xf]
  %v58 = vld [vmem:[%s0 + $0x1c] sm:$0xf]
  %v59 = vld [vmem:[%s1] sm:$0xf]
  %v60 = vld [vmem:[%s1 + $0x4] sm:$0xf]
  %v61 = vld [vmem:[%s1 + $0x8] sm:$0xf]
  %v62 = vld [vmem:[%s1 + $0xc] sm:$0xf]
  %v63 = vld [vmem:[%s3] sm:$0x1]
  %v65 = vlaneseq
  %v66 = vshrl.u32 %v65, 7
  %v67 = vsub.s32 0, %v66
  %v68 = vrot.slane %v63, %v67
  %v78 = vunpack.c.l.b16 %v51
  %v79 = vunpack.c.l.b16 %v52
  %v80 = vunpack.c.l.b16 %v53
  %v81 = vunpack.c.l.b16 %v54
  %v82 = vunpack.c.l.b16 %v55
  %v83 = vunpack.c.l.b16 %v56
  %v84 = vunpack.c.l.b16 %v57
  %v85 = vunpack.c.l.b16 %v58
  %v86 = vpack.c.b16 %v79, %v78
  %v87 = vpack.c.b16 %v81, %v80
  %v88 = vpack.c.b16 %v83, %v82
  %v89 = vpack.c.b16 %v85, %v84
  %v94 = vunpack.c.l.b16 %v59
  %v95 = vunpack.c.l.b16 %v60
  %v96 = vunpack.c.l.b16 %v61
  %v97 = vunpack.c.l.b16 %v62
  %v98 = vpack.c.b16 %v95, %v94
  %v99 = vpack.c.b16 %v97, %v96
  %vm102 = vcmask 261120
  %v104 = vsel %vm102, %v86, 0
  %v107 = vsel %vm102, %v87, 0
  %v110 = vsel %vm102, %v88, 0
  %v113 = vsel %vm102, %v89, 0
  %115 = vmatprep.subr.bf16.mxu0 0
  %116 = vmatpush1.bf16.msra.mxu0 %v98
  %117 = vmatprep.subr.bf16.mxu0 0
  %118 = vmatpush1.bf16.msra.mxu0 %v99
  %119 = vmatprep.subr.bf16.mxu0 0
  %120 = vmatpush1.bf16.msra.mxu0 0
  %121 = vmatprep.subr.bf16.mxu0 0
  %122 = vmatpush1.bf16.msra.mxu0 0
  %123 = vmatprep.subr.bf16.mxu0 0
  %124 = vmatpush1.bf16.msra.mxu0 0
  %125 = vmatprep.subr.bf16.mxu0 0
  %126 = vmatpush1.bf16.msra.mxu0 0
  %127 = vmatprep.subr.bf16.mxu0 0
  %128 = vmatpush1.bf16.msra.mxu0 0
  %129 = vmatprep.subr.bf16.mxu0 0
  %130 = vmatpush1.bf16.msra.mxu0 0
  %131 = vmatprep.subr.bf16.mxu0 0
  %132 = vmatpush1.bf16.msra.mxu0 0
  %133 = vmatprep.subr.bf16.mxu0 0
  %134 = vmatpush1.bf16.msra.mxu0 0
  %135 = vmatprep.subr.bf16.mxu0 0
  %136 = vmatpush1.bf16.msra.mxu0 0
  %137 = vmatprep.subr.bf16.mxu0 0
  %138 = vmatpush1.bf16.msra.mxu0 0
  %139 = vmatprep.subr.bf16.mxu0 0
  %140 = vmatpush1.bf16.msra.mxu0 0
  %141 = vmatprep.subr.bf16.mxu0 0
  %142 = vmatpush1.bf16.msra.mxu0 0
  %143 = vmatprep.subr.bf16.mxu0 0
  %144 = vmatpush1.bf16.msra.mxu0 0
  %145 = vmatprep.subr.bf16.mxu0 0
  %146 = vmatpush1.bf16.msra.mxu0 0
  %147 = vmatprep.mubr.bf16.mxu0 0
  %148 = vmatmul.mubr.bf16.gmra.mrb[0].mxu0 %v104
  %v149 = vpop.f32.mrb[0].mxu0
  %v150 = vadd.f32 %v68, %v149
  %v151 = vpop.f32.mrb[0].mxu0
  %v152 = vpop.f32.mrb[0].mxu0
  %v153 = vadd.f32 %v68, %v152
  %v154 = vpop.f32.mrb[0].mxu0
  %155 = vmatprep.mubr.bf16.mxu0 0
  %156 = vmatmul.mubr.bf16.gmra.mrb[0].mxu0 %v107
  %v157 = vpop.f32.mrb[0].mxu0
  %v158 = vadd.f32 %v68, %v157
  %v159 = vpop.f32.mrb[0].mxu0
  %v160 = vpop.f32.mrb[0].mxu0
  %v161 = vadd.f32 %v68, %v160
  %v162 = vpop.f32.mrb[0].mxu0
  %163 = vmatprep.mubr.bf16.mxu0 0
  %164 = vmatmul.mubr.bf16.gmra.mrb[0].mxu0 %v110
  %v165 = vpop.f32.mrb[0].mxu0
  %v166 = vadd.f32 %v68, %v165
  %v167 = vpop.f32.mrb[0].mxu0
  %v168 = vpop.f32.mrb[0].mxu0
  %v169 = vadd.f32 %v68, %v168
  %v170 = vpop.f32.mrb[0].mxu0
  %171 = vmatprep.mubr.bf16.mxu0 0
  %172 = vmatmul.mubr.bf16.gmra.mrb[0].mxu0 %v113
  %v173 = vpop.f32.mrb[0].mxu0
  %v174 = vadd.f32 %v68, %v173
  %v175 = vpop.f32.mrb[0].mxu0
  %v176 = vpop.f32.mrb[0].mxu0
  %v177 = vadd.f32 %v68, %v176
  %v178 = vpop.f32.mrb[0].mxu0
  %179 = vdwg.mxu0
  %v180 = vpack.c.bf16 %v150, %v150
  %v181 = vpack.c.bf16 %v153, %v153
  %v182 = vpack.c.bf16 %v158, %v158
  %v183 = vpack.c.bf16 %v161, %v161
  %v184 = vpack.c.bf16 %v166, %v166
  %v185 = vpack.c.bf16 %v169, %v169
  %v186 = vpack.c.bf16 %v174, %v174
  %v187 = vpack.c.bf16 %v177, %v177
  %188 = vst [vmem:[#allocation4] sm:$0xf] %v180
  %189 = vst [vmem:[#allocation4 + $0x4] sm:$0xf] %v181
  %190 = vst [vmem:[#allocation4 + $0x8] sm:$0xf] %v182
  %191 = vst [vmem:[#allocation4 + $0xc] sm:$0xf] %v183
  %192 = vst [vmem:[#allocation4 + $0x10] sm:$0xf] %v184
  %193 = vst [vmem:[#allocation4 + $0x14] sm:$0xf] %v185
  %194 = vst [vmem:[#allocation4 + $0x18] sm:$0xf] %v186
  %195 = vst [vmem:[#allocation4 + $0x1c] sm:$0xf] %v187
  %v196 = vld [vmem:[%s2] sm:$0xf]
  %v197 = vld [vmem:[%s2 + $0x4] sm:$0xf]
  %v198 = vld [vmem:[%s2 + $0x8] sm:$0xf]
  %v199 = vld [vmem:[%s2 + $0xc] sm:$0xf]
  %v200 = vlaneseq
  %v201 = vand.u32 %v200, 127
  %vm202 = vcmp.ge.s32.totalorder %v201, 64
  %vm203 = vcmp.lt.s32.totalorder %v201, 96
  %vm204 = vmand %vm202, %vm203
  %v205 = vld [vmem:[#allocation2] sm:$0xff]
  %v206 = vld [vmem:[#allocation3] sm:$0xff]
  %v207 = vld [vmem:[#allocation4] sm:$0xf]
  %v208 = vpack.c.bf16 %v205, %v205
  %v213 = vunpack.c.l.b16 %v196
  %v214 = vunpack.c.l.b16 %v197
  %v215 = vunpack.c.l.b16 %v198
  %v216 = vunpack.c.l.b16 %v199
  %v217 = vpack.c.b16 %v214, %v213
  %v218 = vpack.c.b16 %v216, %v215
  %v222 = vsel %vm102, %v208, 0
  %224 = vmatprep.subr.bf16.mxu0 0
  %225 = vmatpush1.bf16.msra.mxu0 %v217
  %226 = vmatprep.subr.bf16.mxu0 0
  %227 = vmatpush1.bf16.msra.mxu0 %v218
  %228 = vmatprep.subr.bf16.mxu0 0
  %229 = vmatpush1.bf16.msra.mxu0 0
  %230 = vmatprep.subr.bf16.mxu0 0
  %231 = vmatpush1.bf16.msra.mxu0 0
  %232 = vmatprep.subr.bf16.mxu0 0
  %233 = vmatpush1.bf16.msra.mxu0 0
  %234 = vmatprep.subr.bf16.mxu0 0
  %235 = vmatpush1.bf16.msra.mxu0 0
  %236 = vmatprep.subr.bf16.mxu0 0
  %237 = vmatpush1.bf16.msra.mxu0 0
  %238 = vmatprep.subr.bf16.mxu0 0
  %239 = vmatpush1.bf16.msra.mxu0 0
  %240 = vmatprep.subr.bf16.mxu0 0
  %241 = vmatpush1.bf16.msra.mxu0 0
  %242 = vmatprep.subr.bf16.mxu0 0
  %243 = vmatpush1.bf16.msra.mxu0 0
  %244 = vmatprep.subr.bf16.mxu0 0
  %245 = vmatpush1.bf16.msra.mxu0 0
  %246 = vmatprep.subr.bf16.mxu0 0
  %247 = vmatpush1.bf16.msra.mxu0 0
  %248 = vmatprep.subr.bf16.mxu0 0
  %249 = vmatpush1.bf16.msra.mxu0 0
  %250 = vmatprep.subr.bf16.mxu0 0
  %251 = vmatpush1.bf16.msra.mxu0 0
  %252 = vmatprep.subr.bf16.mxu0 0
  %253 = vmatpush1.bf16.msra.mxu0 0
  %254 = vmatprep.subr.bf16.mxu0 0
  %255 = vmatpush1.bf16.msra.mxu0 0
  %256 = vmatprep.mubr.bf16.mxu0 0
  %257 = vmatmul.mubr.bf16.gmra.mrb[0].mxu0 %v222
  %v258 = vpop.f32.mrb[0].mxu0
  %v259 = vadd.f32 0.0, %v258
  %v260 = vpop.f32.mrb[0].mxu0
  %v261 = vpop.f32.mrb[0].mxu0
  %v262 = vpop.f32.mrb[0].mxu0
  %263 = vdwg.mxu0
  %v264 = vunpack.c.l.bf16 %v207
  %v265 = vadd.f32 %v264, %v259
  %v266 = vtanh.pop %v265
  %v267 = vxor.u32 %v265, 2147483648
  %v268 = vmul.f32 %v267, 1.442695
  %v269 = vpow.pop %v268
  %v270 = vadd.f32 %v269, 1.0
  %v271 = vrcp.pop %v270
  %v272 = vmul.f32 1.0, %v271
  %v273 = vsel %vm204, %v266, %v272
  %275 = vrot.lane.b32.xlu0 %v206, 32
  %v276 = vpop.permute.xlu0 %275
  %v278 = vmul.f32 %v273, %v276
  %280 = vrot.lane.b32.xlu0 %v273, 64
  %v281 = vpop.permute.xlu0 %280
  %v283 = vmul.f32 %v273, %v281
  %285 = vrot.lane.b32.xlu0 %v283, 32
  %v286 = vpop.permute.xlu0 %285
  %v288 = vadd.f32 %v278, %v286
  %v289 = vtanh.pop %v288
  %291 = vrot.lane.b32.xlu0 %v289, 64
  %v292 = vpop.permute.xlu0 %291
  %v294 = vmul.f32 %v273, %v292
  %v295 = vpack.c.bf16 %v294, %v294
  %v297 = vunpack.c.l.b16 %v295
  %v298 = vpack.c.b16 %v297, %v297
  %299 = vrot.lane.b32.xlu0 %v298, 32
  %v300 = vpop.permute.xlu0 %299
  %vm302 = vcmask 257024
  %303 = vst.msk [vmem:[#allocation5] sm:$0xf] %vm302, %v300
  %s304 = scalar_lea.vmem [#allocation4], 4
  %v305 = vld [vmem:[%s304] sm:$0xf]
  %306 = vrot.lane.b32.xlu0 %v295, 32
  %v307 = vpop.permute.xlu0 %306
  %v309 = vsel %vm102, %v307, 0
  %311 = vmatprep.subr.bf16.mxu0 0
  %312 = vmatpush1.bf16.msra.mxu0 %v217
  %313 = vmatprep.subr.bf16.mxu0 0
  %314 = vmatpush1.bf16.msra.mxu0 %v218
  %315 = vmatprep.subr.bf16.mxu0 0
  %316 = vmatpush1.bf16.msra.mxu0 0
  %317 = vmatprep.subr.bf16.mxu0 0
  %318 = vmatpush1.bf16.msra.mxu0 0
  %319 = vmatprep.subr.bf16.mxu0 0
  %320 = vmatpush1.bf16.msra.mxu0 0
  %321 = vmatprep.subr.bf16.mxu0 0
  %322 = vmatpush1.bf16.msra.mxu0 0
  %323 = vmatprep.subr.bf16.mxu0 0
  %324 = vmatpush1.bf16.msra.mxu0 0
  %325 = vmatprep.subr.bf16.mxu0 0
  %326 = vmatpush1.bf16.msra.mxu0 0
  %327 = vmatprep.subr.bf16.mxu0 0
  %328 = vmatpush1.bf16.msra.mxu0 0
  %329 = vmatprep.subr.bf16.mxu0 0
  %330 = vmatpush1.bf16.msra.mxu0 0
  %331 = vmatprep.subr.bf16.mxu0 0
  %332 = vmatpush1.bf16.msra.mxu0 0
  %333 = vmatprep.subr.bf16.mxu0 0
  %334 = vmatpush1.bf16.msra.mxu0 0
  %335 = vmatprep.subr.bf16.mxu0 0
  %336 = vmatpush1.bf16.msra.mxu0 0
  %337 = vmatprep.subr.bf16.mxu0 0
  %338 = vmatpush1.bf16.msra.mxu0 0
  %339 = vmatprep.subr.bf16.mxu0 0
  %340 = vmatpush1.bf16.msra.mxu0 0
  %341 = vmatprep.subr.bf16.mxu0 0
  %342 = vmatpush1.bf16.msra.mxu0 0
  %343 = vmatprep.mubr.bf16.mxu0 0
  %344 = vmatmul.mubr.bf16.gmra.mrb[0].mxu0 %v309
  %v345 = vpop.f32.mrb[0].mxu0
  %v346 = vadd.f32 0.0, %v345
  %v347 = vpop.f32.mrb[0].mxu0
  %v348 = vpop.f32.mrb[0].mxu0
  %v349 = vpop.f32.mrb[0].mxu0
  %350 = vdwg.mxu0
  %v351 = vunpack.c.l.bf16 %v305
  %v352 = vadd.f32 %v351, %v346
  %v353 = vtanh.pop %v352
  %v354 = vxor.u32 %v352, 2147483648
  %v355 = vmul.f32 %v354, 1.442695
  %v356 = vpow.pop %v355
  %v357 = vadd.f32 %v356, 1.0
  %v358 = vrcp.pop %v357
  %v359 = vmul.f32 1.0, %v358
  %v360 = vsel %vm204, %v353, %v359
  %v361 = vmul.f32 %v360, %v288
  %363 = vrot.lane.b32.xlu0 %v360, 64
  %v364 = vpop.permute.xlu0 %363
  %v366 = vmul.f32 %v360, %v364
  %368 = vrot.lane.b32.xlu0 %v366, 32
  %v369 = vpop.permute.xlu0 %368
  %v371 = vadd.f32 %v361, %v369
  %v372 = vtanh.pop %v371
  %374 = vrot.lane.b32.xlu0 %v372, 64
  %v375 = vpop.permute.xlu0 %374
  %v377 = vmul.f32 %v360, %v375
  %v378 = vpack.c.bf16 %v377, %v377
  %v380 = vunpack.c.l.b16 %v378
  %v381 = vpack.c.b16 %v380, %v380
  %382 = vrot.lane.b32.xlu0 %v381, 32
  %v383 = vpop.permute.xlu0 %382
  %s385 = scalar_lea.vmem [#allocation5], 4
  %386 = vst.msk [vmem:[%s385] sm:$0xf] %vm302, %v383
  %s387 = scalar_lea.vmem [#allocation4], 8
  %v388 = vld [vmem:[%s387] sm:$0xf]
  %389 = vrot.lane.b32.xlu0 %v378, 32
  %v390 = vpop.permute.xlu0 %389
  %v392 = vsel %vm102, %v390, 0
  %394 = vmatprep.subr.bf16.mxu0 0
  %395 = vmatpush1.bf16.msra.mxu0 %v217
  %396 = vmatprep.subr.bf16.mxu0 0
  %397 = vmatpush1.bf16.msra.mxu0 %v218
  %398 = vmatprep.subr.bf16.mxu0 0
  %399 = vmatpush1.bf16.msra.mxu0 0
  %400 = vmatprep.subr.bf16.mxu0 0
  %401 = vmatpush1.bf16.msra.mxu0 0
  %402 = vmatprep.subr.bf16.mxu0 0
  %403 = vmatpush1.bf16.msra.mxu0 0
  %404 = vmatprep.subr.bf16.mxu0 0
  %405 = vmatpush1.bf16.msra.mxu0 0
  %406 = vmatprep.subr.bf16.mxu0 0
  %407 = vmatpush1.bf16.msra.mxu0 0
  %408 = vmatprep.subr.bf16.mxu0 0
  %409 = vmatpush1.bf16.msra.mxu0 0
  %410 = vmatprep.subr.bf16.mxu0 0
  %411 = vmatpush1.bf16.msra.mxu0 0
  %412 = vmatprep.subr.bf16.mxu0 0
  %413 = vmatpush1.bf16.msra.mxu0 0
  %414 = vmatprep.subr.bf16.mxu0 0
  %415 = vmatpush1.bf16.msra.mxu0 0
  %416 = vmatprep.subr.bf16.mxu0 0
  %417 = vmatpush1.bf16.msra.mxu0 0
  %418 = vmatprep.subr.bf16.mxu0 0
  %419 = vmatpush1.bf16.msra.mxu0 0
  %420 = vmatprep.subr.bf16.mxu0 0
  %421 = vmatpush1.bf16.msra.mxu0 0
  %422 = vmatprep.subr.bf16.mxu0 0
  %423 = vmatpush1.bf16.msra.mxu0 0
  %424 = vmatprep.subr.bf16.mxu0 0
  %425 = vmatpush1.bf16.msra.mxu0 0
  %426 = vmatprep.mubr.bf16.mxu0 0
  %427 = vmatmul.mubr.bf16.gmra.mrb[0].mxu0 %v392
  %v428 = vpop.f32.mrb[0].mxu0
  %v429 = vadd.f32 0.0, %v428
  %v430 = vpop.f32.mrb[0].mxu0
  %v431 = vpop.f32.mrb[0].mxu0
  %v432 = vpop.f32.mrb[0].mxu0
  %433 = vdwg.mxu0
  %v434 = vunpack.c.l.bf16 %v388
  %v435 = vadd.f32 %v434, %v429
  %v436 = vtanh.pop %v435
  %v437 = vxor.u32 %v435, 2147483648
  %v438 = vmul.f32 %v437, 1.442695
  %v439 = vpow.pop %v438
  %v440 = vadd.f32 %v439, 1.0
  %v441 = vrcp.pop %v440
  %v442 = vmul.f32 1.0, %v441
  %v443 = vsel %vm204, %v436, %v442
  %v444 = vmul.f32 %v443, %v371
  %446 = vrot.lane.b32.xlu0 %v443, 64
  %v447 = vpop.permute.xlu0 %446
  %v449 = vmul.f32 %v443, %v447
  %451 = vrot.lane.b32.xlu0 %v449, 32
  %v452 = vpop.permute.xlu0 %451
  %v454 = vadd.f32 %v444, %v452
  %v455 = vtanh.pop %v454
  %457 = vrot.lane.b32.xlu0 %v455, 64
  %v458 = vpop.permute.xlu0 %457
  %v460 = vmul.f32 %v443, %v458
  %v461 = vpack.c.bf16 %v460, %v460
  %v463 = vunpack.c.l.b16 %v461
  %v464 = vpack.c.b16 %v463, %v463
  %465 = vrot.lane.b32.xlu0 %v464, 32
  %v466 = vpop.permute.xlu0 %465
  %s468 = scalar_lea.vmem [#allocation5], 8
  %469 = vst.msk [vmem:[%s468] sm:$0xf] %vm302, %v466
  %s470 = scalar_lea.vmem [#allocation4], 12
  %v471 = vld [vmem:[%s470] sm:$0xf]
  %472 = vrot.lane.b32.xlu0 %v461, 32
  %v473 = vpop.permute.xlu0 %472
  %v475 = vsel %vm102, %v473, 0
  %477 = vmatprep.subr.bf16.mxu0 0
  %478 = vmatpush1.bf16.msra.mxu0 %v217
  %479 = vmatprep.subr.bf16.mxu0 0
  %480 = vmatpush1.bf16.msra.mxu0 %v218
  %481 = vmatprep.subr.bf16.mxu0 0
  %482 = vmatpush1.bf16.msra.mxu0 0
  %483 = vmatprep.subr.bf16.mxu0 0
  %484 = vmatpush1.bf16.msra.mxu0 0
  %485 = vmatprep.subr.bf16.mxu0 0
  %486 = vmatpush1.bf16.msra.mxu0 0
  %487 = vmatprep.subr.bf16.mxu0 0
  %488 = vmatpush1.bf16.msra.mxu0 0
  %489 = vmatprep.subr.bf16.mxu0 0
  %490 = vmatpush1.bf16.msra.mxu0 0
  %491 = vmatprep.subr.bf16.mxu0 0
  %492 = vmatpush1.bf16.msra.mxu0 0
  %493 = vmatprep.subr.bf16.mxu0 0
  %494 = vmatpush1.bf16.msra.mxu0 0
  %495 = vmatprep.subr.bf16.mxu0 0
  %496 = vmatpush1.bf16.msra.mxu0 0
  %497 = vmatprep.subr.bf16.mxu0 0
  %498 = vmatpush1.bf16.msra.mxu0 0
  %499 = vmatprep.subr.bf16.mxu0 0
  %500 = vmatpush1.bf16.msra.mxu0 0
  %501 = vmatprep.subr.bf16.mxu0 0
  %502 = vmatpush1.bf16.msra.mxu0 0
  %503 = vmatprep.subr.bf16.mxu0 0
  %504 = vmatpush1.bf16.msra.mxu0 0
  %505 = vmatprep.subr.bf16.mxu0 0
  %506 = vmatpush1.bf16.msra.mxu0 0
  %507 = vmatprep.subr.bf16.mxu0 0
  %508 = vmatpush1.bf16.msra.mxu0 0
  %509 = vmatprep.mubr.bf16.mxu0 0
  %510 = vmatmul.mubr.bf16.gmra.mrb[0].mxu0 %v475
  %v511 = vpop.f32.mrb[0].mxu0
  %v512 = vadd.f32 0.0, %v511
  %v513 = vpop.f32.mrb[0].mxu0
  %v514 = vpop.f32.mrb[0].mxu0
  %v515 = vpop.f32.mrb[0].mxu0
  %516 = vdwg.mxu0
  %v517 = vunpack.c.l.bf16 %v471
  %v518 = vadd.f32 %v517, %v512
  %v519 = vtanh.pop %v518
  %v520 = vxor.u32 %v518, 2147483648
  %v521 = vmul.f32 %v520, 1.442695
  %v522 = vpow.pop %v521
  %v523 = vadd.f32 %v522, 1.0
  %v524 = vrcp.pop %v523
  %v525 = vmul.f32 1.0, %v524
  %v526 = vsel %vm204, %v519, %v525
  %v527 = vmul.f32 %v526, %v454
  %529 = vrot.lane.b32.xlu0 %v526, 64
  %v530 = vpop.permute.xlu0 %529
  %v532 = vmul.f32 %v526, %v530
  %534 = vrot.lane.b32.xlu0 %v532, 32
  %v535 = vpop.permute.xlu0 %534
  %v537 = vadd.f32 %v527, %v535
  %v538 = vtanh.pop %v537
  %540 = vrot.lane.b32.xlu0 %v538, 64
  %v541 = vpop.permute.xlu0 %540
  %v543 = vmul.f32 %v526, %v541
  %v544 = vpack.c.bf16 %v543, %v543
  %v546 = vunpack.c.l.b16 %v544
  %v547 = vpack.c.b16 %v546, %v546
  %548 = vrot.lane.b32.xlu0 %v547, 32
  %v549 = vpop.permute.xlu0 %548
  %s551 = scalar_lea.vmem [#allocation5], 12
  %552 = vst.msk [vmem:[%s551] sm:$0xf] %vm302, %v549
  %s553 = scalar_lea.vmem [#allocation4], 16
  %v554 = vld [vmem:[%s553] sm:$0xf]
  %555 = vrot.lane.b32.xlu0 %v544, 32
  %v556 = vpop.permute.xlu0 %555
  %v558 = vsel %vm102, %v556, 0
  %560 = vmatprep.subr.bf16.mxu0 0
  %561 = vmatpush1.bf16.msra.mxu0 %v217
  %562 = vmatprep.subr.bf16.mxu0 0
  %563 = vmatpush1.bf16.msra.mxu0 %v218
  %564 = vmatprep.subr.bf16.mxu0 0
  %565 = vmatpush1.bf16.msra.mxu0 0
  %566 = vmatprep.subr.bf16.mxu0 0
  %567 = vmatpush1.bf16.msra.mxu0 0
  %568 = vmatprep.subr.bf16.mxu0 0
  %569 = vmatpush1.bf16.msra.mxu0 0
  %570 = vmatprep.subr.bf16.mxu0 0
  %571 = vmatpush1.bf16.msra.mxu0 0
  %572 = vmatprep.subr.bf16.mxu0 0
  %573 = vmatpush1.bf16.msra.mxu0 0
  %574 = vmatprep.subr.bf16.mxu0 0
  %575 = vmatpush1.bf16.msra.mxu0 0
  %576 = vmatprep.subr.bf16.mxu0 0
  %577 = vmatpush1.bf16.msra.mxu0 0
  %578 = vmatprep.subr.bf16.mxu0 0
  %579 = vmatpush1.bf16.msra.mxu0 0
  %580 = vmatprep.subr.bf16.mxu0 0
  %581 = vmatpush1.bf16.msra.mxu0 0
  %582 = vmatprep.subr.bf16.mxu0 0
  %583 = vmatpush1.bf16.msra.mxu0 0
  %584 = vmatprep.subr.bf16.mxu0 0
  %585 = vmatpush1.bf16.msra.mxu0 0
  %586 = vmatprep.subr.bf16.mxu0 0
  %587 = vmatpush1.bf16.msra.mxu0 0
  %588 = vmatprep.subr.bf16.mxu0 0
  %589 = vmatpush1.bf16.msra.mxu0 0
  %590 = vmatprep.subr.bf16.mxu0 0
  %591 = vmatpush1.bf16.msra.mxu0 0
  %592 = vmatprep.mubr.bf16.mxu0 0
  %593 = vmatmul.mubr.bf16.gmra.mrb[0].mxu0 %v558
  %v594 = vpop.f32.mrb[0].mxu0
  %v595 = vadd.f32 0.0, %v594
  %v596 = vpop.f32.mrb[0].mxu0
  %v597 = vpop.f32.mrb[0].mxu0
  %v598 = vpop.f32.mrb[0].mxu0
  %599 = vdwg.mxu0
  %v600 = vunpack.c.l.bf16 %v554
  %v601 = vadd.f32 %v600, %v595
  %v602 = vtanh.pop %v601
  %v603 = vxor.u32 %v601, 2147483648
  %v604 = vmul.f32 %v603, 1.442695
  %v605 = vpow.pop %v604
  %v606 = vadd.f32 %v605, 1.0
  %v607 = vrcp.pop %v606
  %v608 = vmul.f32 1.0, %v607
  %v609 = vsel %vm204, %v602, %v608
  %v610 = vmul.f32 %v609, %v537
  %612 = vrot.lane.b32.xlu0 %v609, 64
  %v613 = vpop.permute.xlu0 %612
  %v615 = vmul.f32 %v609, %v613
  %617 = vrot.lane.b32.xlu0 %v615, 32
  %v618 = vpop.permute.xlu0 %617
  %v620 = vadd.f32 %v610, %v618
  %v621 = vtanh.pop %v620
  %623 = vrot.lane.b32.xlu0 %v621, 64
  %v624 = vpop.permute.xlu0 %623
  %v626 = vmul.f32 %v609, %v624
  %v627 = vpack.c.bf16 %v626, %v626
  %v629 = vunpack.c.l.b16 %v627
  %v630 = vpack.c.b16 %v629, %v629
  %631 = vrot.lane.b32.xlu0 %v630, 32
  %v632 = vpop.permute.xlu0 %631
  %s634 = scalar_lea.vmem [#allocation5], 16
  %635 = vst.msk [vmem:[%s634] sm:$0xf] %vm302, %v632
  %s636 = scalar_lea.vmem [#allocation4], 20
  %v637 = vld [vmem:[%s636] sm:$0xf]
  %638 = vrot.lane.b32.xlu0 %v627, 32
  %v639 = vpop.permute.xlu0 %638
  %v641 = vsel %vm102, %v639, 0
  %643 = vmatprep.subr.bf16.mxu0 0
  %644 = vmatpush1.bf16.msra.mxu0 %v217
  %645 = vmatprep.subr.bf16.mxu0 0
  %646 = vmatpush1.bf16.msra.mxu0 %v218
  %647 = vmatprep.subr.bf16.mxu0 0
  %648 = vmatpush1.bf16.msra.mxu0 0
  %649 = vmatprep.subr.bf16.mxu0 0
  %650 = vmatpush1.bf16.msra.mxu0 0
  %651 = vmatprep.subr.bf16.mxu0 0
  %652 = vmatpush1.bf16.msra.mxu0 0
  %653 = vmatprep.subr.bf16.mxu0 0
  %654 = vmatpush1.bf16.msra.mxu0 0
  %655 = vmatprep.subr.bf16.mxu0 0
  %656 = vmatpush1.bf16.msra.mxu0 0
  %657 = vmatprep.subr.bf16.mxu0 0
  %658 = vmatpush1.bf16.msra.mxu0 0
  %659 = vmatprep.subr.bf16.mxu0 0
  %660 = vmatpush1.bf16.msra.mxu0 0
  %661 = vmatprep.subr.bf16.mxu0 0
  %662 = vmatpush1.bf16.msra.mxu0 0
  %663 = vmatprep.subr.bf16.mxu0 0
  %664 = vmatpush1.bf16.msra.mxu0 0
  %665 = vmatprep.subr.bf16.mxu0 0
  %666 = vmatpush1.bf16.msra.mxu0 0
  %667 = vmatprep.subr.bf16.mxu0 0
  %668 = vmatpush1.bf16.msra.mxu0 0
  %669 = vmatprep.subr.bf16.mxu0 0
  %670 = vmatpush1.bf16.msra.mxu0 0
  %671 = vmatprep.subr.bf16.mxu0 0
  %672 = vmatpush1.bf16.msra.mxu0 0
  %673 = vmatprep.subr.bf16.mxu0 0
  %674 = vmatpush1.bf16.msra.mxu0 0
  %675 = vmatprep.mubr.bf16.mxu0 0
  %676 = vmatmul.mubr.bf16.gmra.mrb[0].mxu0 %v641
  %v677 = vpop.f32.mrb[0].mxu0
  %v678 = vadd.f32 0.0, %v677
  %v679 = vpop.f32.mrb[0].mxu0
  %v680 = vpop.f32.mrb[0].mxu0
  %v681 = vpop.f32.mrb[0].mxu0
  %682 = vdwg.mxu0
  %v683 = vunpack.c.l.bf16 %v637
  %v684 = vadd.f32 %v683, %v678
  %v685 = vtanh.pop %v684
  %v686 = vxor.u32 %v684, 2147483648
  %v687 = vmul.f32 %v686, 1.442695
  %v688 = vpow.pop %v687
  %v689 = vadd.f32 %v688, 1.0
  %v690 = vrcp.pop %v689
  %v691 = vmul.f32 1.0, %v690
  %v692 = vsel %vm204, %v685, %v691
  %v693 = vmul.f32 %v692, %v620
  %695 = vrot.lane.b32.xlu0 %v692, 64
  %v696 = vpop.permute.xlu0 %695
  %v698 = vmul.f32 %v692, %v696
  %700 = vrot.lane.b32.xlu0 %v698, 32
  %v701 = vpop.permute.xlu0 %700
  %v703 = vadd.f32 %v693, %v701
  %v704 = vtanh.pop %v703
  %706 = vrot.lane.b32.xlu0 %v704, 64
  %v707 = vpop.permute.xlu0 %706
  %v709 = vmul.f32 %v692, %v707
  %v710 = vpack.c.bf16 %v709, %v709
  %v712 = vunpack.c.l.b16 %v710
  %v713 = vpack.c.b16 %v712, %v712
  %714 = vrot.lane.b32.xlu0 %v713, 32
  %v715 = vpop.permute.xlu0 %714
  %s717 = scalar_lea.vmem [#allocation5], 20
  %718 = vst.msk [vmem:[%s717] sm:$0xf] %vm302, %v715
  %s719 = scalar_lea.vmem [#allocation4], 24
  %v720 = vld [vmem:[%s719] sm:$0xf]
  %721 = vrot.lane.b32.xlu0 %v710, 32
  %v722 = vpop.permute.xlu0 %721
  %v724 = vsel %vm102, %v722, 0
  %726 = vmatprep.subr.bf16.mxu0 0
  %727 = vmatpush1.bf16.msra.mxu0 %v217
  %728 = vmatprep.subr.bf16.mxu0 0
  %729 = vmatpush1.bf16.msra.mxu0 %v218
  %730 = vmatprep.subr.bf16.mxu0 0
  %731 = vmatpush1.bf16.msra.mxu0 0
  %732 = vmatprep.subr.bf16.mxu0 0
  %733 = vmatpush1.bf16.msra.mxu0 0
  %734 = vmatprep.subr.bf16.mxu0 0
  %735 = vmatpush1.bf16.msra.mxu0 0
  %736 = vmatprep.subr.bf16.mxu0 0
  %737 = vmatpush1.bf16.msra.mxu0 0
  %738 = vmatprep.subr.bf16.mxu0 0
  %739 = vmatpush1.bf16.msra.mxu0 0
  %740 = vmatprep.subr.bf16.mxu0 0
  %741 = vmatpush1.bf16.msra.mxu0 0
  %742 = vmatprep.subr.bf16.mxu0 0
  %743 = vmatpush1.bf16.msra.mxu0 0
  %744 = vmatprep.subr.bf16.mxu0 0
  %745 = vmatpush1.bf16.msra.mxu0 0
  %746 = vmatprep.subr.bf16.mxu0 0
  %747 = vmatpush1.bf16.msra.mxu0 0
  %748 = vmatprep.subr.bf16.mxu0 0
  %749 = vmatpush1.bf16.msra.mxu0 0
  %750 = vmatprep.subr.bf16.mxu0 0
  %751 = vmatpush1.bf16.msra.mxu0 0
  %752 = vmatprep.subr.bf16.mxu0 0
  %753 = vmatpush1.bf16.msra.mxu0 0
  %754 = vmatprep.subr.bf16.mxu0 0
  %755 = vmatpush1.bf16.msra.mxu0 0
  %756 = vmatprep.subr.bf16.mxu0 0
  %757 = vmatpush1.bf16.msra.mxu0 0
  %758 = vmatprep.mubr.bf16.mxu0 0
  %759 = vmatmul.mubr.bf16.gmra.mrb[0].mxu0 %v724
  %v760 = vpop.f32.mrb[0].mxu0
  %v761 = vadd.f32 0.0, %v760
  %v762 = vpop.f32.mrb[0].mxu0
  %v763 = vpop.f32.mrb[0].mxu0
  %v764 = vpop.f32.mrb[0].mxu0
  %765 = vdwg.mxu0
  %v766 = vunpack.c.l.bf16 %v720
  %v767 = vadd.f32 %v766, %v761
  %v768 = vtanh.pop %v767
  %v769 = vxor.u32 %v767, 2147483648
  %v770 = vmul.f32 %v769, 1.442695
  %v771 = vpow.pop %v770
  %v772 = vadd.f32 %v771, 1.0
  %v773 = vrcp.pop %v772
  %v774 = vmul.f32 1.0, %v773
  %v775 = vsel %vm204, %v768, %v774
  %v776 = vmul.f32 %v775, %v703
  %778 = vrot.lane.b32.xlu0 %v775, 64
  %v779 = vpop.permute.xlu0 %778
  %v781 = vmul.f32 %v775, %v779
  %783 = vrot.lane.b32.xlu0 %v781, 32
  %v784 = vpop.permute.xlu0 %783
  %v786 = vadd.f32 %v776, %v784
  %v787 = vtanh.pop %v786
  %789 = vrot.lane.b32.xlu0 %v787, 64
  %v790 = vpop.permute.xlu0 %789
  %v792 = vmul.f32 %v775, %v790
  %v793 = vpack.c.bf16 %v792, %v792
  %v795 = vunpack.c.l.b16 %v793
  %v796 = vpack.c.b16 %v795, %v795
  %797 = vrot.lane.b32.xlu0 %v796, 32
  %v798 = vpop.permute.xlu0 %797
  %s800 = scalar_lea.vmem [#allocation5], 24
  %801 = vst.msk [vmem:[%s800] sm:$0xf] %vm302, %v798
  %s802 = scalar_lea.vmem [#allocation4], 28
  %v803 = vld [vmem:[%s802] sm:$0xf]
  %804 = vrot.lane.b32.xlu0 %v793, 32
  %v805 = vpop.permute.xlu0 %804
  %v807 = vsel %vm102, %v805, 0
  %809 = vmatprep.subr.bf16.mxu0 0
  %810 = vmatpush1.bf16.msra.mxu0 %v217
  %811 = vmatprep.subr.bf16.mxu0 0
  %812 = vmatpush1.bf16.msra.mxu0 %v218
  %813 = vmatprep.subr.bf16.mxu0 0
  %814 = vmatpush1.bf16.msra.mxu0 0
  %815 = vmatprep.subr.bf16.mxu0 0
  %816 = vmatpush1.bf16.msra.mxu0 0
  %817 = vmatprep.subr.bf16.mxu0 0
  %818 = vmatpush1.bf16.msra.mxu0 0
  %819 = vmatprep.subr.bf16.mxu0 0
  %820 = vmatpush1.bf16.msra.mxu0 0
  %821 = vmatprep.subr.bf16.mxu0 0
  %822 = vmatpush1.bf16.msra.mxu0 0
  %823 = vmatprep.subr.bf16.mxu0 0
  %824 = vmatpush1.bf16.msra.mxu0 0
  %825 = vmatprep.subr.bf16.mxu0 0
  %826 = vmatpush1.bf16.msra.mxu0 0
  %827 = vmatprep.subr.bf16.mxu0 0
  %828 = vmatpush1.bf16.msra.mxu0 0
  %829 = vmatprep.subr.bf16.mxu0 0
  %830 = vmatpush1.bf16.msra.mxu0 0
  %831 = vmatprep.subr.bf16.mxu0 0
  %832 = vmatpush1.bf16.msra.mxu0 0
  %833 = vmatprep.subr.bf16.mxu0 0
  %834 = vmatpush1.bf16.msra.mxu0 0
  %835 = vmatprep.subr.bf16.mxu0 0
  %836 = vmatpush1.bf16.msra.mxu0 0
  %837 = vmatprep.subr.bf16.mxu0 0
  %838 = vmatpush1.bf16.msra.mxu0 0
  %839 = vmatprep.subr.bf16.mxu0 0
  %840 = vmatpush1.bf16.msra.mxu0 0
  %841 = vmatprep.mubr.bf16.mxu0 0
  %842 = vmatmul.mubr.bf16.gmra.mrb[0].mxu0 %v807
  %v843 = vpop.f32.mrb[0].mxu0
  %v844 = vadd.f32 0.0, %v843
  %v845 = vpop.f32.mrb[0].mxu0
  %v846 = vpop.f32.mrb[0].mxu0
  %v847 = vpop.f32.mrb[0].mxu0
  %848 = vdwg.mxu0
  %v849 = vunpack.c.l.bf16 %v803
  %v850 = vadd.f32 %v849, %v844
  %v851 = vtanh.pop %v850
  %v852 = vxor.u32 %v850, 2147483648
  %v853 = vmul.f32 %v852, 1.442695
  %v854 = vpow.pop %v853
  %v855 = vadd.f32 %v854, 1.0
  %v856 = vrcp.pop %v855
  %v857 = vmul.f32 1.0, %v856
  %v858 = vsel %vm204, %v851, %v857
  %v859 = vmul.f32 %v858, %v786
  %861 = vrot.lane.b32.xlu0 %v858, 64
  %v862 = vpop.permute.xlu0 %861
  %v864 = vmul.f32 %v858, %v862
  %866 = vrot.lane.b32.xlu0 %v864, 32
  %v867 = vpop.permute.xlu0 %866
  %v869 = vadd.f32 %v859, %v867
  %v870 = vtanh.pop %v869
  %872 = vrot.lane.b32.xlu0 %v870, 64
  %v873 = vpop.permute.xlu0 %872
  %v875 = vmul.f32 %v858, %v873
  %v876 = vpack.c.bf16 %v875, %v875
  %v878 = vunpack.c.l.b16 %v876
  %v879 = vpack.c.b16 %v878, %v878
  %880 = vrot.lane.b32.xlu0 %v879, 32
  %v881 = vpop.permute.xlu0 %880
  %s883 = scalar_lea.vmem [#allocation5], 28
  %884 = vst.msk [vmem:[%s883] sm:$0xf] %vm302, %v881
  %886 = vrot.lane.b32.xlu0 %v875, 32
  %v887 = vpop.permute.xlu0 %886
  %889 = vst.msk [vmem:[#allocation2] sm:$0xff] %vm102, %v887
  %891 = vrot.lane.b32.xlu0 %v869, 96
  %v892 = vpop.permute.xlu0 %891
  %894 = vst.msk [vmem:[#allocation3] sm:$0xff] %vm102, %v892
  %v895 = vld [vmem:[#allocation5] sm:$0xf]
  %v896 = vld [vmem:[#allocation5 + $0x4] sm:$0xf]
  %v897 = vld [vmem:[#allocation5 + $0x8] sm:$0xf]
  %v898 = vld [vmem:[#allocation5 + $0xc] sm:$0xf]
  %v899 = vld [vmem:[#allocation5 + $0x10] sm:$0xf]
  %v900 = vld [vmem:[#allocation5 + $0x14] sm:$0xf]
  %v901 = vld [vmem:[#allocation5 + $0x18] sm:$0xf]
  %v902 = vld [vmem:[#allocation5 + $0x1c] sm:$0xf]
  %v903 = vld [vmem:[%s6] sm:$0xf]
  %v904 = vld [vmem:[%s6 + $0x4] sm:$0xf]
  %v905 = vld [vmem:[%s6 + $0x8] sm:$0xf]
  %v906 = vld [vmem:[%s6 + $0xc] sm:$0xf]
  %v907 = vld [vmem:[%s7] sm:$0x1]
  %v909 = vlaneseq
  %v910 = vshrl.u32 %v909, 7
  %v911 = vsub.s32 0, %v910
  %v912 = vrot.slane %v907, %v911
  %v922 = vunpack.c.l.b16 %v895
  %v923 = vunpack.c.l.b16 %v896
  %v924 = vunpack.c.l.b16 %v897
  %v925 = vunpack.c.l.b16 %v898
  %v926 = vunpack.c.l.b16 %v899
  %v927 = vunpack.c.l.b16 %v900
  %v928 = vunpack.c.l.b16 %v901
  %v929 = vunpack.c.l.b16 %v902
  %v930 = vpack.c.b16 %v923, %v922
  %v931 = vpack.c.b16 %v925, %v924
  %v932 = vpack.c.b16 %v927, %v926
  %v933 = vpack.c.b16 %v929, %v928
  %v938 = vunpack.c.l.b16 %v903
  %v939 = vunpack.c.l.b16 %v904
  %v940 = vunpack.c.l.b16 %v905
  %v941 = vunpack.c.l.b16 %v906
  %v942 = vpack.c.b16 %v939, %v938
  %v943 = vpack.c.b16 %v941, %v940
  %v947 = vsel %vm102, %v930, 0
  %v950 = vsel %vm102, %v931, 0
  %v953 = vsel %vm102, %v932, 0
  %v956 = vsel %vm102, %v933, 0
  %958 = vmatprep.subr.bf16.mxu0 0
  %959 = vmatpush1.bf16.msra.mxu0 %v942
  %960 = vmatprep.subr.bf16.mxu0 0
  %961 = vmatpush1.bf16.msra.mxu0 %v943
  %962 = vmatprep.subr.bf16.mxu0 0
  %963 = vmatpush1.bf16.msra.mxu0 0
  %964 = vmatprep.subr.bf16.mxu0 0
  %965 = vmatpush1.bf16.msra.mxu0 0
  %966 = vmatprep.subr.bf16.mxu0 0
  %967 = vmatpush1.bf16.msra.mxu0 0
  %968 = vmatprep.subr.bf16.mxu0 0
  %969 = vmatpush1.bf16.msra.mxu0 0
  %970 = vmatprep.subr.bf16.mxu0 0
  %971 = vmatpush1.bf16.msra.mxu0 0
  %972 = vmatprep.subr.bf16.mxu0 0
  %973 = vmatpush1.bf16.msra.mxu0 0
  %974 = vmatprep.subr.bf16.mxu0 0
  %975 = vmatpush1.bf16.msra.mxu0 0
  %976 = vmatprep.subr.bf16.mxu0 0
  %977 = vmatpush1.bf16.msra.mxu0 0
  %978 = vmatprep.subr.bf16.mxu0 0
  %979 = vmatpush1.bf16.msra.mxu0 0
  %980 = vmatprep.subr.bf16.mxu0 0
  %981 = vmatpush1.bf16.msra.mxu0 0
  %982 = vmatprep.subr.bf16.mxu0 0
  %983 = vmatpush1.bf16.msra.mxu0 0
  %984 = vmatprep.subr.bf16.mxu0 0
  %985 = vmatpush1.bf16.msra.mxu0 0
  %986 = vmatprep.subr.bf16.mxu0 0
  %987 = vmatpush1.bf16.msra.mxu0 0
  %988 = vmatprep.subr.bf16.mxu0 0
  %989 = vmatpush1.bf16.msra.mxu0 0
  %990 = vmatprep.mubr.bf16.mxu0 0
  %991 = vmatmul.mubr.bf16.gmra.mrb[0].mxu0 %v947
  %v992 = vpop.f32.mrb[0].mxu0
  %v993 = vadd.f32 %v912, %v992
  %v994 = vpop.f32.mrb[0].mxu0
  %v995 = vpop.f32.mrb[0].mxu0
  %v996 = vadd.f32 %v912, %v995
  %v997 = vpop.f32.mrb[0].mxu0
  %998 = vmatprep.mubr.bf16.mxu0 0
  %999 = vmatmul.mubr.bf16.gmra.mrb[0].mxu0 %v950
  %v1000 = vpop.f32.mrb[0].mxu0
  %v1001 = vadd.f32 %v912, %v1000
  %v1002 = vpop.f32.mrb[0].mxu0
  %v1003 = vpop.f32.mrb[0].mxu0
  %v1004 = vadd.f32 %v912, %v1003
  %v1005 = vpop.f32.mrb[0].mxu0
  %1006 = vmatprep.mubr.bf16.mxu0 0
  %1007 = vmatmul.mubr.bf16.gmra.mrb[0].mxu0 %v953
  %v1008 = vpop.f32.mrb[0].mxu0
  %v1009 = vadd.f32 %v912, %v1008
  %v1010 = vpop.f32.mrb[0].mxu0
  %v1011 = vpop.f32.mrb[0].mxu0
  %v1012 = vadd.f32 %v912, %v1011
  %v1013 = vpop.f32.mrb[0].mxu0
  %1014 = vmatprep.mubr.bf16.mxu0 0
  %1015 = vmatmul.mubr.bf16.gmra.mrb[0].mxu0 %v956
  %v1016 = vpop.f32.mrb[0].mxu0
  %v1017 = vadd.f32 %v912, %v1016
  %v1018 = vpop.f32.mrb[0].mxu0
  %v1019 = vpop.f32.mrb[0].mxu0
  %v1020 = vadd.f32 %v912, %v1019
  %v1021 = vpop.f32.mrb[0].mxu0
  %1022 = vdwg.mxu0
  %v1023 = vxor.u32 %v993, 2147483648
  %v1024 = vxor.u32 %v996, 2147483648
  %v1025 = vxor.u32 %v1001, 2147483648
  %v1026 = vxor.u32 %v1004, 2147483648
  %v1027 = vxor.u32 %v1009, 2147483648
  %v1028 = vxor.u32 %v1012, 2147483648
  %v1029 = vxor.u32 %v1017, 2147483648
  %v1030 = vxor.u32 %v1020, 2147483648
  %v1031 = vmul.f32 %v1023, 1.442695
  %v1032 = vpow.pop %v1031
  %v1033 = vmul.f32 %v1024, 1.442695
  %v1034 = vpow.pop %v1033
  %v1035 = vmul.f32 %v1025, 1.442695
  %v1036 = vpow.pop %v1035
  %v1037 = vmul.f32 %v1026, 1.442695
  %v1038 = vpow.pop %v1037
  %v1039 = vmul.f32 %v1027, 1.442695
  %v1040 = vpow.pop %v1039
  %v1041 = vmul.f32 %v1028, 1.442695
  %v1042 = vpow.pop %v1041
  %v1043 = vmul.f32 %v1029, 1.442695
  %v1044 = vpow.pop %v1043
  %v1045 = vmul.f32 %v1030, 1.442695
  %v1046 = vpow.pop %v1045
  %v1047 = vadd.f32 %v1032, 1.0
  %v1048 = vadd.f32 %v1034, 1.0
  %v1049 = vadd.f32 %v1036, 1.0
  %v1050 = vadd.f32 %v1038, 1.0
  %v1051 = vadd.f32 %v1040, 1.0
  %v1052 = vadd.f32 %v1042, 1.0
  %v1053 = vadd.f32 %v1044, 1.0
  %v1054 = vadd.f32 %v1046, 1.0
  %v1055 = vrcp.pop %v1047
  %v1056 = vmul.f32 1.0, %v1055
  %v1057 = vrcp.pop %v1048
  %v1058 = vmul.f32 1.0, %v1057
  %v1059 = vrcp.pop %v1049
  %v1060 = vmul.f32 1.0, %v1059
  %v1061 = vrcp.pop %v1050
  %v1062 = vmul.f32 1.0, %v1061
  %v1063 = vrcp.pop %v1051
  %v1064 = vmul.f32 1.0, %v1063
  %v1065 = vrcp.pop %v1052
  %v1066 = vmul.f32 1.0, %v1065
  %v1067 = vrcp.pop %v1053
  %v1068 = vmul.f32 1.0, %v1067
  %v1069 = vrcp.pop %v1054
  %v1070 = vmul.f32 1.0, %v1069
  %1071 = vst [vmem:[%s8] sm:$0xff] %v1056
  %1072 = vst [vmem:[%s8 + $0x8] sm:$0xff] %v1058
  %1073 = vst [vmem:[%s8 + $0x10] sm:$0xff] %v1060
  %1074 = vst [vmem:[%s8 + $0x18] sm:$0xff] %v1062
  %1075 = vst [vmem:[%s8 + $0x20] sm:$0xff] %v1064
  %1076 = vst [vmem:[%s8 + $0x28] sm:$0xff] %v1066
  %1077 = vst [vmem:[%s8 + $0x30] sm:$0xff] %v1068
  %1078 = vst [vmem:[%s8 + $0x38] sm:$0xff] %v1070
  // Predicated region
  $region38: #{dkt_forward.1} parent=0 // pred_check
    _
  $region39: #{dkt_forward.1} parent=0 // pred_check_branch
    %1080 = sbr.rel (0) target = $region41
  $region40: #{dkt_forward.1} parent=0 // pred_region
    _
  $region41: #{dkt_forward.1} parent=0 // pred_fallthru
    _
  // Predicated region
  $region42: #{dkt_forward.1} parent=0 // pred_check
    _
  $region43: #{dkt_forward.1} parent=0 // pred_check_branch
    %1082 = sbr.rel (0) target = $region45
  $region44: #{dkt_forward.1} parent=0 // pred_region
    _
  $region45: #{dkt_forward.1} parent=0 // pred_fallthru
    _

</llo_original>
